<compile_context>
chip_gen: v5e
topology: v5e:2x2
jax: 0.10.0
libtpu: 0.0.40
codegen_flags: <defaults>
</compile_context>

<pallas_src>
import functools

import numpy as np
import jax
import jax.numpy as jnp
from jax import lax
from jax.experimental import pallas as pl
from jax.experimental.pallas import tpu as pltpu

BN_EPS = 1e-5


# ----------------------------- param preprocessing -------------------------- #

def fold_bn(gamma, beta, mean, var):
    scale = gamma / jnp.sqrt(var + BN_EPS)
    bias = beta - mean * scale
    return scale, bias


def _vmem_limit_bytes():
    # Raise the 32 MiB scoped default where 128 MiB is physically available
    # (v5e/v6e), stay under v7x's 64 MiB physical VMEM.
    try:
        cap = int(pltpu.get_tpu_info().vmem_capacity_bytes)
    except Exception:
        cap = 64 * 1024 * 1024
    return max(32 * 1024 * 1024, min(96 * 1024 * 1024, (cap * 3) // 4))


# ------------------------------ kernel helpers ------------------------------- #

def _write_padded(scr, interior):
    """Write `interior` (H,W,C) into the centre of a (H+2,W+2,C) halo scratch.

    Only the four 1-px border strips are (re)zeroed each step; the interior is
    fully overwritten, so this is correct regardless of grid iteration order
    (megacore-safe) and avoids a full-scratch zero store per step."""
    Hp, Wp, C = scr.shape
    H, W = Hp - 2, Wp - 2
    zrow = jnp.zeros((1, Wp, C), scr.dtype)
    zcol = jnp.zeros((Hp, 1, C), scr.dtype)
    scr[pl.ds(0, 1), :, :] = zrow
    scr[pl.ds(H + 1, 1), :, :] = zrow
    scr[:, pl.ds(0, 1), :] = zcol
    scr[:, pl.ds(W + 1, 1), :] = zcol
    scr[pl.ds(1, H), pl.ds(1, W), :] = interior.astype(scr.dtype)


def _dw3x3_from_halo(scr, wdw_ref, out_h, out_w, stride):
    """3x3 depthwise conv (pad=1, given stride) with BN scale pre-folded into
    wdw_ref. Taps are read directly from the halo scratch ref (strided pl.ds
    for stride>1), so only out_h x out_w positions are ever computed."""
    acc = None
    for ky in range(3):
        for kx in range(3):
            if stride == 1:
                tap = scr[pl.ds(ky, out_h), pl.ds(kx, out_w), :]
            else:
                tap = scr[pl.ds(ky, out_h, stride=stride),
                          pl.ds(kx, out_w, stride=stride), :]
            term = tap * wdw_ref[ky * 3 + kx, :]
            acc = term if acc is None else acc + term
    return acc


# ------------------------------- Pallas kernels ------------------------------ #

def _branch2_s1_kernel(x2_ref, w1_ref, b1_ref, wdw_ref, bdw_ref, w2_ref, b2_ref,
                       o_ref, xp_scr):
    # x2_ref: (1,H,W,bf); weights BN-folded; output is branch2 only (bf chans).
    _, H, W, bf = x2_ref.shape
    mmt = w1_ref.dtype

    # 1x1 conv + BN + ReLU (f32 accumulation).
    x2 = x2_ref[0].reshape(H * W, bf)
    y = jnp.maximum(
        jnp.dot(x2.astype(mmt), w1_ref[...],
                preferred_element_type=jnp.float32) + b1_ref[...], 0.0)

    # Depthwise 3x3 + BN via halo scratch (taps read from the ref).
    _write_padded(xp_scr, y.reshape(H, W, bf))
    z = _dw3x3_from_halo(xp_scr, wdw_ref, H, W, 1).reshape(H * W, bf) + bdw_ref[...]

    # Final 1x1 conv + BN + ReLU.
    out = jnp.maximum(
        jnp.dot(z.astype(mmt), w2_ref[...],
                preferred_element_type=jnp.float32) + b2_ref[...], 0.0)
    o_ref[0] = out.reshape(H, W, bf).astype(o_ref.dtype)


def _strided_kernel(x_ref, wdw1_ref, bdw1_ref, wp1_ref, bp1_ref,
                    wp2a_ref, bp2a_ref, wdw2_ref, bdw2_ref, wp2b_ref, bp2b_ref,
                    o1_ref, o2_ref, xp1_scr, xp2_scr, *, stride):
    # x_ref: (1,H,W,Cin). Outputs: branch1 and branch2, each (1,Ho,Wo,bf).
    # The spatial subsample happens at the depthwise taps (strided reads), so
    # the 1x1 matmuls and the output stores only see Ho x Wo positions.
    _, H, W, cin = x_ref.shape
    _, Ho, Wo, bf = o1_ref.shape
    mmt = wp1_ref.dtype
    x3 = x_ref[0].astype(jnp.float32)

    # ---- branch1: dw3x3(stride)+BN -> 1x1+BN+ReLU -------------------------
    _write_padded(xp1_scr, x3)
    z1 = (_dw3x3_from_halo(xp1_scr, wdw1_ref, Ho, Wo, stride)
          .reshape(Ho * Wo, cin) + bdw1_ref[...])
    out1 = jnp.maximum(
        jnp.dot(z1.astype(mmt), wp1_ref[...],
                preferred_element_type=jnp.float32) + bp1_ref[...], 0.0)
    o1_ref[0] = out1.reshape(Ho, Wo, bf).astype(o1_ref.dtype)

    # ---- branch2: 1x1+BN+ReLU (dense) -> dw3x3(stride)+BN -> 1x1+BN+ReLU ---
    y = jnp.maximum(
        jnp.dot(x3.reshape(H * W, cin).astype(mmt), wp2a_ref[...],
                preferred_element_type=jnp.float32) + bp2a_ref[...], 0.0)
    _write_padded(xp2_scr, y.reshape(H, W, bf))
    z2 = (_dw3x3_from_halo(xp2_scr, wdw2_ref, Ho, Wo, stride)
          .reshape(Ho * Wo, bf) + bdw2_ref[...])
    out2 = jnp.maximum(
        jnp.dot(z2.astype(mmt), wp2b_ref[...],
                preferred_element_type=jnp.float32) + bp2b_ref[...], 0.0)
    o2_ref[0] = out2.reshape(Ho, Wo, bf).astype(o2_ref.dtype)


# ------------------------------ fused wrappers ------------------------------ #

def _branch2_s1(x2, p, matmul_dtype):
    N, H, W, bf = x2.shape
    mmt = x2.dtype if matmul_dtype is None else matmul_dtype
    g1, b1 = fold_bn(**p["bn1"])
    gd, bd = fold_bn(**p["bn_dw"])
    g2, b2 = fold_bn(**p["bn2"])
    w1 = (p["w1"] * g1[None, :]).astype(mmt)
    wdw = (p["wdw"] * gd[None, None, :]).reshape(9, bf)   # stays f32 (VPU path)
    w2 = (p["w2"] * g2[None, :]).astype(mmt)

    rep = lambda n: (0, 0)
    return pl.pallas_call(
        _branch2_s1_kernel,
        out_shape=jax.ShapeDtypeStruct((N, H, W, bf), x2.dtype),
        grid=(N,),
        in_specs=[
            pl.BlockSpec((1, H, W, bf), lambda n: (n, 0, 0, 0)),   # x2
            pl.BlockSpec((bf, bf), rep),                           # w1
            pl.BlockSpec((1, bf), rep),                            # b1
            pl.BlockSpec((9, bf), rep),                            # wdw
            pl.BlockSpec((1, bf), rep),                            # bdw
            pl.BlockSpec((bf, bf), rep),                           # w2
            pl.BlockSpec((1, bf), rep),                            # b2
        ],
        out_specs=pl.BlockSpec((1, H, W, bf), lambda n: (n, 0, 0, 0)),
        scratch_shapes=[pltpu.VMEM((H + 2, W + 2, bf), jnp.float32)],
        compiler_params=pltpu.CompilerParams(
            dimension_semantics=("parallel",),
            vmem_limit_bytes=_vmem_limit_bytes()),
    )(x2, w1, b1.reshape(1, bf), wdw, bd.reshape(1, bf), w2, b2.reshape(1, bf))


def _fused_strided(x, params, stride, matmul_dtype):
    N, H, W, cin = x.shape
    Ho = (H - 1) // stride + 1
    Wo = (W - 1) // stride + 1
    p1, p2 = params["branch1"], params["branch2"]
    bf = p1["w"].shape[1]
    mmt = x.dtype if matmul_dtype is None else matmul_dtype

    g1d, b1d = fold_bn(**p1["bn_dw"])
    g1p, b1p = fold_bn(**p1["bn"])
    wdw1 = (p1["wdw"] * g1d[None, None, :]).reshape(9, cin)
    wp1 = (p1["w"] * g1p[None, :]).astype(mmt)

    g2a, b2a = fold_bn(**p2["bn1"])
    g2d, b2d = fold_bn(**p2["bn_dw"])
    g2b, b2b = fold_bn(**p2["bn2"])
    wp2a = (p2["w1"] * g2a[None, :]).astype(mmt)
    wdw2 = (p2["wdw"] * g2d[None, None, :]).reshape(9, bf)
    wp2b = (p2["w2"] * g2b[None, :]).astype(mmt)

    rep = lambda n: (0, 0)
    img = pl.BlockSpec((1, Ho, Wo, bf), lambda n: (n, 0, 0, 0))
    return pl.pallas_call(
        functools.partial(_strided_kernel, stride=stride),
        out_shape=(jax.ShapeDtypeStruct((N, Ho, Wo, bf), x.dtype),
                   jax.ShapeDtypeStruct((N, Ho, Wo, bf), x.dtype)),
        grid=(N,),
        in_specs=[
            pl.BlockSpec((1, H, W, cin), lambda n: (n, 0, 0, 0)),  # x
            pl.BlockSpec((9, cin), rep),                           # wdw1
            pl.BlockSpec((1, cin), rep),                           # bdw1
            pl.BlockSpec((cin, bf), rep),                          # wp1
            pl.BlockSpec((1, bf), rep),                            # bp1
            pl.BlockSpec((cin, bf), rep),                          # wp2a
            pl.BlockSpec((1, bf), rep),                            # bp2a
            pl.BlockSpec((9, bf), rep),                            # wdw2
            pl.BlockSpec((1, bf), rep),                            # bdw2
            pl.BlockSpec((bf, bf), rep),                           # wp2b
            pl.BlockSpec((1, bf), rep),                            # bp2b
        ],
        out_specs=[img, img],
        scratch_shapes=[pltpu.VMEM((H + 2, W + 2, cin), jnp.float32),
                        pltpu.VMEM((H + 2, W + 2, bf), jnp.float32)],
        compiler_params=pltpu.CompilerParams(
            dimension_semantics=("parallel",),
            vmem_limit_bytes=_vmem_limit_bytes()),
    )(x, wdw1, b1d.reshape(1, cin), wp1, b1p.reshape(1, bf),
      wp2a, b2a.reshape(1, bf), wdw2, b2d.reshape(1, bf),
      wp2b, b2b.reshape(1, bf))


def _interleave_groups_nchw(g0, g1):
    # channel_shuffle(cat([g0, g1], dim=1), groups=2):
    #   out[:, 2k] = g0[:, k], out[:, 2k+1] = g1[:, k]
    # (folded into the wrapper relayout instead of an in-kernel scatter matmul)
    N, bf, H, W = g0.shape
    return jnp.stack([g0, g1], axis=2).reshape(N, 2 * bf, H, W)


@functools.partial(jax.jit, static_argnames=("stride", "matmul_dtype"))
def inverted_residual_forward(x_nchw, params, stride, matmul_dtype=None):
    if stride == 1:
        bf = x_nchw.shape[1] // 2
        x2 = jnp.transpose(x_nchw[:, bf:], (0, 2, 3, 1))           # NHWC right half
        right = _branch2_s1(x2, params["branch2"], matmul_dtype)   # (N,H,W,bf)
        return _interleave_groups_nchw(x_nchw[:, :bf],
                                       jnp.transpose(right, (0, 3, 1, 2)))
    x = jnp.transpose(x_nchw, (0, 2, 3, 1))                        # NCHW -> NHWC
    br1, br2 = _fused_strided(x, params, stride, matmul_dtype)
    return _interleave_groups_nchw(jnp.transpose(br1, (0, 3, 1, 2)),
                                   jnp.transpose(br2, (0, 3, 1, 2)))


# ----------------------- deterministic parameter init ----------------------- #

def init_inverted_residual_params(key, inp, oup, stride):
    assert 1 <= stride <= 3
    bf = oup // 2
    assert stride != 1 or inp == bf * 2
    ks = iter(jax.random.split(key, 64))

    def conv1x1(cin, cout):
        return 0.3 * jax.random.normal(next(ks), (cin, cout), jnp.float32)

    def dw(c):
        return 0.3 * jax.random.normal(next(ks), (3, 3, c), jnp.float32)

    def bn(c):
        return dict(
            gamma=1.0 + 0.1 * jax.random.normal(next(ks), (c,), jnp.float32),
            beta=0.1 * jax.random.normal(next(ks), (c,), jnp.float32),
            mean=0.1 * jax.random.normal(next(ks), (c,), jnp.float32),
            var=1.0 + 0.1 * jax.random.uniform(next(ks), (c,), jnp.float32),
        )

    params = {}
    if stride > 1:
        params["branch1"] = dict(wdw=dw(inp), bn_dw=bn(inp),
                                 w=conv1x1(inp, bf), bn=bn(bf))
    cin2 = inp if stride > 1 else bf
    params["branch2"] = dict(w1=conv1x1(cin2, bf), bn1=bn(bf),
                             wdw=dw(bf), bn_dw=bn(bf),
                             w2=conv1x1(bf, bf), bn2=bn(bf))
    return params


# ------------------------------ pure-JAX reference --------------------------- #

def _ref_pw(x, w, bn):
    scale, bias = fold_bn(**bn)
    return jax.nn.relu(jnp.einsum("nhwc,cd->nhwd", x, w) * scale + bias)


def _ref_dw(x, wdw, bn, stride):
    C = x.shape[-1]
    scale, bias = fold_bn(**bn)
    y = lax.conv_general_dilated(
        x, wdw[:, :, None, :],
        window_strides=(stride, stride), padding=((1, 1), (1, 1)),
        dimension_numbers=("NHWC", "HWIO", "NHWC"),
        feature_group_count=C)
    return y * scale + bias


def ref_forward(x_nchw, params, stride):
    x = jnp.transpose(x_nchw, (0, 2, 3, 1))

    def branch2(x2):
        p = params["branch2"]
        y = _ref_pw(x2, p["w1"], p["bn1"])
        z = _ref_dw(y, p["wdw"], p["bn_dw"], stride)
        return _ref_pw(z, p["w2"], p["bn2"])

    if stride == 1:
        c = x.shape[-1] // 2
        cat = jnp.concatenate([x[..., :c], branch2(x[..., c:])], axis=-1)
    else:
        p1 = params["branch1"]
        z = _ref_dw(x, p1["wdw"], p1["bn_dw"], stride)
        cat = jnp.concatenate([_ref_pw(z, p1["w"], p1["bn"]), branch2(x)], axis=-1)

    N, H, W, C = cat.shape
    shuf = cat.reshape(N, H, W, 2, C // 2).transpose(0, 1, 2, 4, 3).reshape(N, H, W, C)
    return jnp.transpose(shuf, (0, 3, 1, 2))


# ----------------------------------- main ------------------------------------ #

if __name__ == "__main__":
    key = jax.random.PRNGKey(0)
    k_x1, k_x2, k_p1, k_p2 = jax.random.split(key, 4)

    # Case 1: stride=1 (requires inp == oup == 2 * branch_features).
    inp1, oup1, stride1 = 16, 16, 1
    x1 = jax.random.normal(k_x1, (2, inp1, 16, 16), jnp.float32)       # NCHW
    p1 = init_inverted_residual_params(k_p1, inp1, oup1, stride1)
    out1 = jax.block_until_ready(inverted_residual_forward(x1, p1, stride=stride1))
    ref1 = jax.block_until_ready(ref_forward(x1, p1, stride1))
    assert out1.shape == (2, oup1, 16, 16)
    np.testing.assert_allclose(np.asarray(out1), np.asarray(ref1), rtol=1e-4, atol=1e-4)

    # Case 2: stride=2 (downsampling block; in-kernel strided subsample).
    inp2, oup2, stride2 = 16, 32, 2
    x2 = jax.random.normal(k_x2, (2, inp2, 16, 16), jnp.float32)       # NCHW
    p2 = init_inverted_residual_params(k_p2, inp2, oup2, stride2)
    out2 = jax.block_until_ready(inverted_residual_forward(x2, p2, stride=stride2))
    ref2 = jax.block_until_ready(ref_forward(x2, p2, stride2))
    assert out2.shape == (2, oup2, 8, 8)
    np.testing.assert_allclose(np.asarray(out2), np.asarray(ref2), rtol=1e-4, atol=1e-4)

    # bf16 MXU-operand fast path (f32 accumulation): relative-error smoke check.
    out1b = jax.block_until_ready(
        inverted_residual_forward(x1, p1, stride=stride1, matmul_dtype=jnp.bfloat16))
    out2b = jax.block_until_ready(
        inverted_residual_forward(x2, p2, stride=stride2, matmul_dtype=jnp.bfloat16))
    for o, r in ((out1b, ref1), (out2b, ref2)):
        rel = (np.linalg.norm(np.asarray(o, np.float64) - np.asarray(r, np.float64))
               / np.linalg.norm(np.asarray(r, np.float64)))
        assert rel < 5e-2, rel

    print("KERNEL_OK")
</pallas_src>

<mosaic_0001>
module attributes {stable_mosaic.version = 11 : i64} {
  func.func @_branch2_s1_kernel(%arg0: i32, %arg1: memref<1x16x16x8xf32, #tpu.memory_space<vmem>>, %arg2: memref<8x8xf32, #tpu.memory_space<vmem>>, %arg3: memref<1x8xf32, #tpu.memory_space<vmem>>, %arg4: memref<9x8xf32, #tpu.memory_space<vmem>>, %arg5: memref<1x8xf32, #tpu.memory_space<vmem>>, %arg6: memref<8x8xf32, #tpu.memory_space<vmem>>, %arg7: memref<1x8xf32, #tpu.memory_space<vmem>>, %arg8: memref<1x16x16x8xf32, #tpu.memory_space<vmem>>, %arg9: memref<18x18x8xf32, #tpu.memory_space<vmem>>) attributes {dimension_semantics = [#tpu.dimension_semantics<parallel>], iteration_bounds = array<i64: 2>, scalar_prefetch = 0 : i64, scratch_operands = 1 : i64, tpu.core_type = #tpu.core_type<tc>, window_params = [{transform_indices = @transform_0, window_bounds = array<i64: 1, 16, 16, 8>}, {pipeline_mode = #tpu.pipeline_mode<synchronous>, transform_indices = @transform_1, window_bounds = array<i64: 8, 8>}, {pipeline_mode = #tpu.pipeline_mode<synchronous>, transform_indices = @transform_2, window_bounds = array<i64: 1, 8>}, {pipeline_mode = #tpu.pipeline_mode<synchronous>, transform_indices = @transform_3, window_bounds = array<i64: 9, 8>}, {pipeline_mode = #tpu.pipeline_mode<synchronous>, transform_indices = @transform_4, window_bounds = array<i64: 1, 8>}, {pipeline_mode = #tpu.pipeline_mode<synchronous>, transform_indices = @transform_5, window_bounds = array<i64: 8, 8>}, {pipeline_mode = #tpu.pipeline_mode<synchronous>, transform_indices = @transform_6, window_bounds = array<i64: 1, 8>}, {transform_indices = @transform_7, window_bounds = array<i64: 1, 16, 16, 8>}]} {
    %c0 = arith.constant 0 : index
    %c0_0 = arith.constant 0 : index
    %c0_1 = arith.constant 0 : index
    %c0_2 = arith.constant 0 : index
    %0 = vector.load %arg1[%c0, %c0_0, %c0_1, %c0_2] : memref<1x16x16x8xf32, #tpu.memory_space<vmem>>, vector<1x16x16x8xf32>
    %1 = vector.shape_cast %0 : vector<1x16x16x8xf32> to vector<16x16x8xf32>
    %2 = vector.shape_cast %1 : vector<16x16x8xf32> to vector<256x8xf32>
    %c0_3 = arith.constant 0 : index
    %c0_4 = arith.constant 0 : index
    %3 = vector.load %arg2[%c0_3, %c0_4] : memref<8x8xf32, #tpu.memory_space<vmem>>, vector<8x8xf32>
    %cst = arith.constant dense<0.000000e+00> : vector<256x8xf32>
    %4 = tpu.matmul %2, %3, %cst {dimension_numbers = #tpu.dot_dimension_numbers<[1], [0], [0], [1], [0, 0, 1, 1], [], []>} : vector<256x8xf32>, vector<8x8xf32>, vector<256x8xf32> -> vector<256x8xf32>
    %c0_5 = arith.constant 0 : index
    %c0_6 = arith.constant 0 : index
    %5 = vector.load %arg3[%c0_5, %c0_6] : memref<1x8xf32, #tpu.memory_space<vmem>>, vector<1x8xf32>
    %6 = vector.broadcast %5 : vector<1x8xf32> to vector<256x8xf32>
    %7 = arith.addf %4, %6 : vector<256x8xf32>
    %cst_7 = arith.constant 0.000000e+00 : f32
    %8 = vector.broadcast %cst_7 : f32 to vector<256x8xf32>
    %9 = arith.maximumf %7, %8 : vector<256x8xf32>
    %10 = vector.shape_cast %9 : vector<256x8xf32> to vector<16x16x8xf32>
    %cst_8 = arith.constant 0.000000e+00 : f32
    %11 = vector.broadcast %cst_8 : f32 to vector<1x18x8xf32>
    %cst_9 = arith.constant 0.000000e+00 : f32
    %12 = vector.broadcast %cst_9 : f32 to vector<18x1x8xf32>
    %c0_10 = arith.constant 0 : index
    %c0_11 = arith.constant 0 : index
    %c0_12 = arith.constant 0 : index
    %13 = vector.load %arg9[%c0_10, %c0_11, %c0_12] : memref<18x18x8xf32, #tpu.memory_space<vmem>>, vector<1x18x8xf32>
    tpu.vector_store %arg9[%c0_10, %c0_11, %c0_12], %11 {strides = array<i32>} : memref<18x18x8xf32, #tpu.memory_space<vmem>>, vector<1x18x8xf32>,
    %c17 = arith.constant 17 : index
    %c0_13 = arith.constant 0 : index
    %c0_14 = arith.constant 0 : index
    %14 = vector.load %arg9[%c17, %c0_13, %c0_14] : memref<18x18x8xf32, #tpu.memory_space<vmem>>, vector<1x18x8xf32>
    tpu.vector_store %arg9[%c17, %c0_13, %c0_14], %11 {strides = array<i32>} : memref<18x18x8xf32, #tpu.memory_space<vmem>>, vector<1x18x8xf32>,
    %c0_15 = arith.constant 0 : index
    %c0_16 = arith.constant 0 : index
    %c0_17 = arith.constant 0 : index
    %15 = vector.load %arg9[%c0_15, %c0_16, %c0_17] : memref<18x18x8xf32, #tpu.memory_space<vmem>>, vector<18x1x8xf32>
    tpu.vector_store %arg9[%c0_15, %c0_16, %c0_17], %12 {strides = array<i32>} : memref<18x18x8xf32, #tpu.memory_space<vmem>>, vector<18x1x8xf32>,
    %c0_18 = arith.constant 0 : index
    %c17_19 = arith.constant 17 : index
    %c0_20 = arith.constant 0 : index
    %16 = vector.load %arg9[%c0_18, %c17_19, %c0_20] : memref<18x18x8xf32, #tpu.memory_space<vmem>>, vector<18x1x8xf32>
    tpu.vector_store %arg9[%c0_18, %c17_19, %c0_20], %12 {strides = array<i32>} : memref<18x18x8xf32, #tpu.memory_space<vmem>>, vector<18x1x8xf32>,
    %c1 = arith.constant 1 : index
    %c1_21 = arith.constant 1 : index
    %c0_22 = arith.constant 0 : index
    %17 = vector.load %arg9[%c1, %c1_21, %c0_22] : memref<18x18x8xf32, #tpu.memory_space<vmem>>, vector<16x16x8xf32>
    tpu.vector_store %arg9[%c1, %c1_21, %c0_22], %10 {strides = array<i32>} : memref<18x18x8xf32, #tpu.memory_space<vmem>>, vector<16x16x8xf32>,
    %c0_23 = arith.constant 0 : index
    %c0_24 = arith.constant 0 : index
    %c0_25 = arith.constant 0 : index
    %18 = vector.load %arg9[%c0_23, %c0_24, %c0_25] : memref<18x18x8xf32, #tpu.memory_space<vmem>>, vector<16x16x8xf32>
    %c0_26 = arith.constant 0 : index
    %c0_27 = arith.constant 0 : index
    %19 = vector.load %arg4[%c0_26, %c0_27] : memref<9x8xf32, #tpu.memory_space<vmem>>, vector<1x8xf32>
    %20 = vector.shape_cast %19 : vector<1x8xf32> to vector<8xf32>
    %21 = vector.shape_cast %20 : vector<8xf32> to vector<1x1x8xf32>
    %22 = vector.broadcast %21 : vector<1x1x8xf32> to vector<16x16x8xf32>
    %23 = arith.mulf %18, %22 : vector<16x16x8xf32>
    %c0_28 = arith.constant 0 : index
    %c1_29 = arith.constant 1 : index
    %c0_30 = arith.constant 0 : index
    %24 = vector.load %arg9[%c0_28, %c1_29, %c0_30] : memref<18x18x8xf32, #tpu.memory_space<vmem>>, vector<16x16x8xf32>
    %c1_31 = arith.constant 1 : index
    %c0_32 = arith.constant 0 : index
    %25 = vector.load %arg4[%c1_31, %c0_32] : memref<9x8xf32, #tpu.memory_space<vmem>>, vector<1x8xf32>
    %26 = vector.shape_cast %25 : vector<1x8xf32> to vector<8xf32>
    %27 = vector.shape_cast %26 : vector<8xf32> to vector<1x1x8xf32>
    %28 = vector.broadcast %27 : vector<1x1x8xf32> to vector<16x16x8xf32>
    %29 = arith.mulf %24, %28 : vector<16x16x8xf32>
    %30 = arith.addf %23, %29 : vector<16x16x8xf32>
    %c0_33 = arith.constant 0 : index
    %c2 = arith.constant 2 : index
    %c0_34 = arith.constant 0 : index
    %31 = vector.load %arg9[%c0_33, %c2, %c0_34] : memref<18x18x8xf32, #tpu.memory_space<vmem>>, vector<16x16x8xf32>
    %c2_35 = arith.constant 2 : index
    %c0_36 = arith.constant 0 : index
    %32 = vector.load %arg4[%c2_35, %c0_36] : memref<9x8xf32, #tpu.memory_space<vmem>>, vector<1x8xf32>
    %33 = vector.shape_cast %32 : vector<1x8xf32> to vector<8xf32>
    %34 = vector.shape_cast %33 : vector<8xf32> to vector<1x1x8xf32>
    %35 = vector.broadcast %34 : vector<1x1x8xf32> to vector<16x16x8xf32>
    %36 = arith.mulf %31, %35 : vector<16x16x8xf32>
    %37 = arith.addf %30, %36 : vector<16x16x8xf32>
    %c1_37 = arith.constant 1 : index
    %c0_38 = arith.constant 0 : index
    %c0_39 = arith.constant 0 : index
    %38 = vector.load %arg9[%c1_37, %c0_38, %c0_39] : memref<18x18x8xf32, #tpu.memory_space<vmem>>, vector<16x16x8xf32>
    %c3 = arith.constant 3 : index
    %c0_40 = arith.constant 0 : index
    %39 = vector.load %arg4[%c3, %c0_40] : memref<9x8xf32, #tpu.memory_space<vmem>>, vector<1x8xf32>
    %40 = vector.shape_cast %39 : vector<1x8xf32> to vector<8xf32>
    %41 = vector.shape_cast %40 : vector<8xf32> to vector<1x1x8xf32>
    %42 = vector.broadcast %41 : vector<1x1x8xf32> to vector<16x16x8xf32>
    %43 = arith.mulf %38, %42 : vector<16x16x8xf32>
    %44 = arith.addf %37, %43 : vector<16x16x8xf32>
    %c1_41 = arith.constant 1 : index
    %c1_42 = arith.constant 1 : index
    %c0_43 = arith.constant 0 : index
    %45 = vector.load %arg9[%c1_41, %c1_42, %c0_43] : memref<18x18x8xf32, #tpu.memory_space<vmem>>, vector<16x16x8xf32>
    %c4 = arith.constant 4 : index
    %c0_44 = arith.constant 0 : index
    %46 = vector.load %arg4[%c4, %c0_44] : memref<9x8xf32, #tpu.memory_space<vmem>>, vector<1x8xf32>
    %47 = vector.shape_cast %46 : vector<1x8xf32> to vector<8xf32>
    %48 = vector.shape_cast %47 : vector<8xf32> to vector<1x1x8xf32>
    %49 = vector.broadcast %48 : vector<1x1x8xf32> to vector<16x16x8xf32>
    %50 = arith.mulf %45, %49 : vector<16x16x8xf32>
    %51 = arith.addf %44, %50 : vector<16x16x8xf32>
    %c1_45 = arith.constant 1 : index
    %c2_46 = arith.constant 2 : index
    %c0_47 = arith.constant 0 : index
    %52 = vector.load %arg9[%c1_45, %c2_46, %c0_47] : memref<18x18x8xf32, #tpu.memory_space<vmem>>, vector<16x16x8xf32>
    %c5 = arith.constant 5 : index
    %c0_48 = arith.constant 0 : index
    %53 = vector.load %arg4[%c5, %c0_48] : memref<9x8xf32, #tpu.memory_space<vmem>>, vector<1x8xf32>
    %54 = vector.shape_cast %53 : vector<1x8xf32> to vector<8xf32>
    %55 = vector.shape_cast %54 : vector<8xf32> to vector<1x1x8xf32>
    %56 = vector.broadcast %55 : vector<1x1x8xf32> to vector<16x16x8xf32>
    %57 = arith.mulf %52, %56 : vector<16x16x8xf32>
    %58 = arith.addf %51, %57 : vector<16x16x8xf32>
    %c2_49 = arith.constant 2 : index
    %c0_50 = arith.constant 0 : index
    %c0_51 = arith.constant 0 : index
    %59 = vector.load %arg9[%c2_49, %c0_50, %c0_51] : memref<18x18x8xf32, #tpu.memory_space<vmem>>, vector<16x16x8xf32>
    %c6 = arith.constant 6 : index
    %c0_52 = arith.constant 0 : index
    %60 = vector.load %arg4[%c6, %c0_52] : memref<9x8xf32, #tpu.memory_space<vmem>>, vector<1x8xf32>
    %61 = vector.shape_cast %60 : vector<1x8xf32> to vector<8xf32>
    %62 = vector.shape_cast %61 : vector<8xf32> to vector<1x1x8xf32>
    %63 = vector.broadcast %62 : vector<1x1x8xf32> to vector<16x16x8xf32>
    %64 = arith.mulf %59, %63 : vector<16x16x8xf32>
    %65 = arith.addf %58, %64 : vector<16x16x8xf32>
    %c2_53 = arith.constant 2 : index
    %c1_54 = arith.constant 1 : index
    %c0_55 = arith.constant 0 : index
    %66 = vector.load %arg9[%c2_53, %c1_54, %c0_55] : memref<18x18x8xf32, #tpu.memory_space<vmem>>, vector<16x16x8xf32>
    %c7 = arith.constant 7 : index
    %c0_56 = arith.constant 0 : index
    %67 = vector.load %arg4[%c7, %c0_56] : memref<9x8xf32, #tpu.memory_space<vmem>>, vector<1x8xf32>
    %68 = vector.shape_cast %67 : vector<1x8xf32> to vector<8xf32>
    %69 = vector.shape_cast %68 : vector<8xf32> to vector<1x1x8xf32>
    %70 = vector.broadcast %69 : vector<1x1x8xf32> to vector<16x16x8xf32>
    %71 = arith.mulf %66, %70 : vector<16x16x8xf32>
    %72 = arith.addf %65, %71 : vector<16x16x8xf32>
    %c2_57 = arith.constant 2 : index
    %c2_58 = arith.constant 2 : index
    %c0_59 = arith.constant 0 : index
    %73 = vector.load %arg9[%c2_57, %c2_58, %c0_59] : memref<18x18x8xf32, #tpu.memory_space<vmem>>, vector<16x16x8xf32>
    %c8 = arith.constant 8 : index
    %c0_60 = arith.constant 0 : index
    %74 = vector.load %arg4[%c8, %c0_60] : memref<9x8xf32, #tpu.memory_space<vmem>>, vector<1x8xf32>
    %75 = vector.shape_cast %74 : vector<1x8xf32> to vector<8xf32>
    %76 = vector.shape_cast %75 : vector<8xf32> to vector<1x1x8xf32>
    %77 = vector.broadcast %76 : vector<1x1x8xf32> to vector<16x16x8xf32>
    %78 = arith.mulf %73, %77 : vector<16x16x8xf32>
    %79 = arith.addf %72, %78 : vector<16x16x8xf32>
    %80 = vector.shape_cast %79 : vector<16x16x8xf32> to vector<256x8xf32>
    %c0_61 = arith.constant 0 : index
    %c0_62 = arith.constant 0 : index
    %81 = vector.load %arg5[%c0_61, %c0_62] : memref<1x8xf32, #tpu.memory_space<vmem>>, vector<1x8xf32>
    %82 = vector.broadcast %81 : vector<1x8xf32> to vector<256x8xf32>
    %83 = arith.addf %80, %82 : vector<256x8xf32>
    %c0_63 = arith.constant 0 : index
    %c0_64 = arith.constant 0 : index
    %84 = vector.load %arg6[%c0_63, %c0_64] : memref<8x8xf32, #tpu.memory_space<vmem>>, vector<8x8xf32>
    %cst_65 = arith.constant dense<0.000000e+00> : vector<256x8xf32>
    %85 = tpu.matmul %83, %84, %cst_65 {dimension_numbers = #tpu.dot_dimension_numbers<[1], [0], [0], [1], [0, 0, 1, 1], [], []>} : vector<256x8xf32>, vector<8x8xf32>, vector<256x8xf32> -> vector<256x8xf32>
    %c0_66 = arith.constant 0 : index
    %c0_67 = arith.constant 0 : index
    %86 = vector.load %arg7[%c0_66, %c0_67] : memref<1x8xf32, #tpu.memory_space<vmem>>, vector<1x8xf32>
    %87 = vector.broadcast %86 : vector<1x8xf32> to vector<256x8xf32>
    %88 = arith.addf %85, %87 : vector<256x8xf32>
    %cst_68 = arith.constant 0.000000e+00 : f32
    %89 = vector.broadcast %cst_68 : f32 to vector<256x8xf32>
    %90 = arith.maximumf %88, %89 : vector<256x8xf32>
    %91 = vector.shape_cast %90 : vector<256x8xf32> to vector<16x16x8xf32>
    %c0_69 = arith.constant 0 : index
    %c0_70 = arith.constant 0 : index
    %c0_71 = arith.constant 0 : index
    %c0_72 = arith.constant 0 : index
    %92 = vector.load %arg8[%c0_69, %c0_70, %c0_71, %c0_72] : memref<1x16x16x8xf32, #tpu.memory_space<vmem>>, vector<1x16x16x8xf32>
    %93 = vector.shape_cast %92 : vector<1x16x16x8xf32> to vector<16x16x8xf32>
    %94 = vector.shape_cast %91 : vector<16x16x8xf32> to vector<1x16x16x8xf32>
    tpu.vector_store %arg8[%c0_69, %c0_70, %c0_71, %c0_72], %94 {strides = array<i32>} : memref<1x16x16x8xf32, #tpu.memory_space<vmem>>, vector<1x16x16x8xf32>,
    return
  }
  func.func @transform_0(%arg0: i32) -> (i32, i32, i32, i32) {
    %c0_i32 = arith.constant 0 : i32
    %c0_i32_0 = arith.constant 0 : i32
    %c0_i32_1 = arith.constant 0 : i32
    %c0_i32_2 = arith.constant 0 : i32
    return %arg0, %c0_i32, %c0_i32_0, %c0_i32_1 : i32, i32, i32, i32
  }
  func.func @transform_1(%arg0: i32) -> (i32, i32) {
    %c0_i32 = arith.constant 0 : i32
    %c0_i32_0 = arith.constant 0 : i32
    %c0_i32_1 = arith.constant 0 : i32
    return %c0_i32, %c0_i32_0 : i32, i32
  }
  func.func @transform_2(%arg0: i32) -> (i32, i32) {
    %c0_i32 = arith.constant 0 : i32
    %c0_i32_0 = arith.constant 0 : i32
    %c0_i32_1 = arith.constant 0 : i32
    return %c0_i32, %c0_i32_0 : i32, i32
  }
  func.func @transform_3(%arg0: i32) -> (i32, i32) {
    %c0_i32 = arith.constant 0 : i32
    %c0_i32_0 = arith.constant 0 : i32
    %c0_i32_1 = arith.constant 0 : i32
    return %c0_i32, %c0_i32_0 : i32, i32
  }
  func.func @transform_4(%arg0: i32) -> (i32, i32) {
    %c0_i32 = arith.constant 0 : i32
    %c0_i32_0 = arith.constant 0 : i32
    %c0_i32_1 = arith.constant 0 : i32
    return %c0_i32, %c0_i32_0 : i32, i32
  }
  func.func @transform_5(%arg0: i32) -> (i32, i32) {
    %c0_i32 = arith.constant 0 : i32
    %c0_i32_0 = arith.constant 0 : i32
    %c0_i32_1 = arith.constant 0 : i32
    return %c0_i32, %c0_i32_0 : i32, i32
  }
  func.func @transform_6(%arg0: i32) -> (i32, i32) {
    %c0_i32 = arith.constant 0 : i32
    %c0_i32_0 = arith.constant 0 : i32
    %c0_i32_1 = arith.constant 0 : i32
    return %c0_i32, %c0_i32_0 : i32, i32
  }
  func.func @transform_7(%arg0: i32) -> (i32, i32, i32, i32) {
    %c0_i32 = arith.constant 0 : i32
    %c0_i32_0 = arith.constant 0 : i32
    %c0_i32_1 = arith.constant 0 : i32
    %c0_i32_2 = arith.constant 0 : i32
    return %arg0, %c0_i32, %c0_i32_0, %c0_i32_1 : i32, i32, i32, i32
  }
}

</mosaic_0001>

<llo_original>
// kernel: inverted_residual_forward.1
$region0: #{inverted_residual_forward.1}
  #allocation0 [shape = 'u32[]', space=smem, size = 0x4, offset = 0x4, fixed_abs, tag = 'smem constant byte address 0x4 - core index']
  #allocation1 [shape = 'u32[72,128]{1,0:T(1,128)}', space=vmem, size = 0x9000, scoped, tag = 'internal scratch']
  #allocation2 [shape = 'f32[18,18,8]{2,1,0:T(8,128)}', space=vmem, size = 0x36000, scoped, tag = 'scratch operand']
  %s0 = inlined_call_operand.vmem [shape: f32[2,16,16,8], index: 0, kind: input, shape index: {}]
  %s1 = inlined_call_operand.vmem [shape: f32[8,8], index: 1, kind: input, shape index: {}]
  %s2 = inlined_call_operand.vmem [shape: f32[1,8], index: 2, kind: input, shape index: {}]
  %s3 = inlined_call_operand.vmem [shape: f32[9,8], index: 3, kind: input, shape index: {}]
  %s4 = inlined_call_operand.vmem [shape: f32[1,8], index: 4, kind: input, shape index: {}]
  %s5 = inlined_call_operand.vmem [shape: f32[8,8], index: 5, kind: input, shape index: {}]
  %s6 = inlined_call_operand.vmem [shape: f32[1,8], index: 6, kind: input, shape index: {}]
  %s7 = inlined_call_operand.vmem [shape: f32[2,16,16,8], index: 7, kind: output, shape index: {}]
  %s8 = sld [smem:[#allocation0]]
  $region61: #{inverted_residual_forward.1} parent=0
    _
  %s10 = ssub.s32 1, %s8
  %s11 = scalar_select 0, %s10, %s8
  loop: start=0, step=1, limit=4
  $region2: #{inverted_residual_forward.1} parent=0 // loop_pre_header
    _
  $region3: #{inverted_residual_forward.1} parent=0 // loop_header
    %s13 = sphi 0, %s17
    %p14 = scmp.ge.s32.totalorder %s13, 4
    %s23 = sphi 0, %s25
    %s26 = sphi 0, %s23
    %s27 = sphi 0, %s26
    %s43 = sphi 0, %s27
    %s47 = sphi 0, %s47
    %s49 = sphi 0, %s47
    %s50 = sphi 0, %s49
    %s64 = sphi 0, %s50
    %s68 = sphi 0, %s68
    %s70 = sphi 0, %s68
    %s71 = sphi 0, %s70
    %s85 = sphi 0, %s71
    %s89 = sphi 0, %s89
    %s91 = sphi 0, %s89
    %s92 = sphi 0, %s91
    %s106 = sphi 0, %s92
    %s110 = sphi 0, %s110
    %s112 = sphi 0, %s110
    %s113 = sphi 0, %s112
    %s127 = sphi 0, %s113
    %s131 = sphi 0, %s131
    %s133 = sphi 0, %s131
    %s134 = sphi 0, %s133
    %s148 = sphi 0, %s134
    %s152 = sphi 0, %s152
    %s154 = sphi 0, %s152
    %s155 = sphi 0, %s154
    %s169 = sphi 0, %s155
    %s175 = sphi 0, %s177
    %s178 = sphi 0, %s175
    %s179 = sphi 0, %s178
    %s195 = sphi 0, %s179
  $region4: #{inverted_residual_forward.1} parent=0 // loop_header_branch
    %16 = sbr.rel (%p14) target = $region8
  $region5: #{inverted_residual_forward.1} parent=0 // loop_body
    %s18 = ssub.s32 %s13, 1
    %s19 = ssub.s32 %s13, 2
    %s20 = sadd.s32 %s13, 1
    %s21 = ssub.s32 %s13, %s20
    %p22 = scmp.eq.s32.totalorder %s21, 0
    %s24 = sadd.s32 %s23, 1
    %s25 = scalar_select %p22, %s23, %s24
    %p28 = pneg %p22
    %p29 = scmp.eq.s32.totalorder %s13, 1
    %p30 = por %p28, %p29
    %p31 = scmp.ne.s32.totalorder %s23, %s26
    %p32 = scmp.eq.s32.totalorder %s13, 0
    %p33 = por %p31, %p32
    %p34 = scmp.ne.s32.totalorder %s23, %s26
    %p35 = scmp.eq.s32.totalorder %s18, 1
    %p36 = por %p34, %p35
    %p37 = scmp.ne.s32.totalorder %s26, %s27
    %p38 = scmp.eq.s32.totalorder %s18, 0
    %p39 = por %p37, %p38
    %p40 = scmp.ne.s32.totalorder %s26, %s27
    %p41 = scmp.eq.s32.totalorder %s19, 1
    %p42 = por %p40, %p41
    %p44 = scmp.ne.s32.totalorder %s27, %s43
    %p45 = scmp.eq.s32.totalorder %s19, 0
    %p46 = por %p44, %p45
    %s48 = sadd.s32 %s47, 1
    %p51 = scmp.eq.s32.totalorder %s13, 1
    %p52 = scmp.ne.s32.totalorder %s47, %s49
    %p53 = scmp.eq.s32.totalorder %s13, 0
    %p54 = por %p52, %p53
    %p55 = scmp.ne.s32.totalorder %s47, %s49
    %p56 = scmp.eq.s32.totalorder %s18, 1
    %p57 = por %p55, %p56
    %p58 = scmp.ne.s32.totalorder %s49, %s50
    %p59 = scmp.eq.s32.totalorder %s18, 0
    %p60 = por %p58, %p59
    %p61 = scmp.ne.s32.totalorder %s49, %s50
    %p62 = scmp.eq.s32.totalorder %s19, 1
    %p63 = por %p61, %p62
    %p65 = scmp.ne.s32.totalorder %s50, %s64
    %p66 = scmp.eq.s32.totalorder %s19, 0
    %p67 = por %p65, %p66
    %s69 = sadd.s32 %s68, 1
    %p72 = scmp.eq.s32.totalorder %s13, 1
    %p73 = scmp.ne.s32.totalorder %s68, %s70
    %p74 = scmp.eq.s32.totalorder %s13, 0
    %p75 = por %p73, %p74
    %p76 = scmp.ne.s32.totalorder %s68, %s70
    %p77 = scmp.eq.s32.totalorder %s18, 1
    %p78 = por %p76, %p77
    %p79 = scmp.ne.s32.totalorder %s70, %s71
    %p80 = scmp.eq.s32.totalorder %s18, 0
    %p81 = por %p79, %p80
    %p82 = scmp.ne.s32.totalorder %s70, %s71
    %p83 = scmp.eq.s32.totalorder %s19, 1
    %p84 = por %p82, %p83
    %p86 = scmp.ne.s32.totalorder %s71, %s85
    %p87 = scmp.eq.s32.totalorder %s19, 0
    %p88 = por %p86, %p87
    %s90 = sadd.s32 %s89, 1
    %p93 = scmp.eq.s32.totalorder %s13, 1
    %p94 = scmp.ne.s32.totalorder %s89, %s91
    %p95 = scmp.eq.s32.totalorder %s13, 0
    %p96 = por %p94, %p95
    %p97 = scmp.ne.s32.totalorder %s89, %s91
    %p98 = scmp.eq.s32.totalorder %s18, 1
    %p99 = por %p97, %p98
    %p100 = scmp.ne.s32.totalorder %s91, %s92
    %p101 = scmp.eq.s32.totalorder %s18, 0
    %p102 = por %p100, %p101
    %p103 = scmp.ne.s32.totalorder %s91, %s92
    %p104 = scmp.eq.s32.totalorder %s19, 1
    %p105 = por %p103, %p104
    %p107 = scmp.ne.s32.totalorder %s92, %s106
    %p108 = scmp.eq.s32.totalorder %s19, 0
    %p109 = por %p107, %p108
    %s111 = sadd.s32 %s110, 1
    %p114 = scmp.eq.s32.totalorder %s13, 1
    %p115 = scmp.ne.s32.totalorder %s110, %s112
    %p116 = scmp.eq.s32.totalorder %s13, 0
    %p117 = por %p115, %p116
    %p118 = scmp.ne.s32.totalorder %s110, %s112
    %p119 = scmp.eq.s32.totalorder %s18, 1
    %p120 = por %p118, %p119
    %p121 = scmp.ne.s32.totalorder %s112, %s113
    %p122 = scmp.eq.s32.totalorder %s18, 0
    %p123 = por %p121, %p122
    %p124 = scmp.ne.s32.totalorder %s112, %s113
    %p125 = scmp.eq.s32.totalorder %s19, 1
    %p126 = por %p124, %p125
    %p128 = scmp.ne.s32.totalorder %s113, %s127
    %p129 = scmp.eq.s32.totalorder %s19, 0
    %p130 = por %p128, %p129
    %s132 = sadd.s32 %s131, 1
    %p135 = scmp.eq.s32.totalorder %s13, 1
    %p136 = scmp.ne.s32.totalorder %s131, %s133
    %p137 = scmp.eq.s32.totalorder %s13, 0
    %p138 = por %p136, %p137
    %p139 = scmp.ne.s32.totalorder %s131, %s133
    %p140 = scmp.eq.s32.totalorder %s18, 1
    %p141 = por %p139, %p140
    %p142 = scmp.ne.s32.totalorder %s133, %s134
    %p143 = scmp.eq.s32.totalorder %s18, 0
    %p144 = por %p142, %p143
    %p145 = scmp.ne.s32.totalorder %s133, %s134
    %p146 = scmp.eq.s32.totalorder %s19, 1
    %p147 = por %p145, %p146
    %p149 = scmp.ne.s32.totalorder %s134, %s148
    %p150 = scmp.eq.s32.totalorder %s19, 0
    %p151 = por %p149, %p150
    %s153 = sadd.s32 %s152, 1
    %p156 = scmp.eq.s32.totalorder %s13, 1
    %p157 = scmp.ne.s32.totalorder %s152, %s154
    %p158 = scmp.eq.s32.totalorder %s13, 0
    %p159 = por %p157, %p158
    %p160 = scmp.ne.s32.totalorder %s152, %s154
    %p161 = scmp.eq.s32.totalorder %s18, 1
    %p162 = por %p160, %p161
    %p163 = scmp.ne.s32.totalorder %s154, %s155
    %p164 = scmp.eq.s32.totalorder %s18, 0
    %p165 = por %p163, %p164
    %p166 = scmp.ne.s32.totalorder %s154, %s155
    %p167 = scmp.eq.s32.totalorder %s19, 1
    %p168 = por %p166, %p167
    %p170 = scmp.ne.s32.totalorder %s155, %s169
    %p171 = scmp.eq.s32.totalorder %s19, 0
    %p172 = por %p170, %p171
    %s173 = ssub.s32 %s13, %s20
    %p174 = scmp.eq.s32.totalorder %s173, 0
    %s176 = sadd.s32 %s175, 1
    %s177 = scalar_select %p174, %s175, %s176
    %p180 = pneg %p174
    %p181 = scmp.eq.s32.totalorder %s13, 1
    %p182 = por %p180, %p181
    %p183 = scmp.ne.s32.totalorder %s175, %s178
    %p184 = scmp.eq.s32.totalorder %s13, 0
    %p185 = por %p183, %p184
    %p186 = scmp.ne.s32.totalorder %s175, %s178
    %p187 = scmp.eq.s32.totalorder %s18, 1
    %p188 = por %p186, %p187
    %p189 = scmp.ne.s32.totalorder %s178, %s179
    %p190 = scmp.eq.s32.totalorder %s18, 0
    %p191 = por %p189, %p190
    %p192 = scmp.ne.s32.totalorder %s178, %s179
    %p193 = scmp.eq.s32.totalorder %s19, 1
    %p194 = por %p192, %p193
    %p196 = scmp.ne.s32.totalorder %s179, %s195
    %p197 = scmp.eq.s32.totalorder %s19, 0
    %p198 = por %p196, %p197
    %p199 = scmp.le.s32.totalorder 1, %s13
    %p200 = scmp.lt.s32.totalorder %s13, 3
    %p201 = pnand %p199, %p200
    %p202 = pneg %p201
    // Predicated region
    $region9: #{inverted_residual_forward.1} parent=5 // pred_check
      _
    $region10: #{inverted_residual_forward.1} parent=5 // pred_check_branch
      %204 = sbr.rel (%p201) target = $region12
    $region11: #{inverted_residual_forward.1} parent=5 // pred_region
      %s205 = ssub.s32 %s13, 1
      // Predicated region
      $region13: #{inverted_residual_forward.1} parent=11 // pred_check
        %p206 = pneg %p60
      $region14: #{inverted_residual_forward.1} parent=11 // pred_check_branch
        %208 = sbr.rel (%p206) target = $region16
      $region15: #{inverted_residual_forward.1} parent=11 // pred_region
        _
      $region16: #{inverted_residual_forward.1} parent=11 // pred_fallthru
        _
      // Predicated region
      $region17: #{inverted_residual_forward.1} parent=11 // pred_check
        %p209 = pneg %p81
      $region18: #{inverted_residual_forward.1} parent=11 // pred_check_branch
        %211 = sbr.rel (%p209) target = $region20
      $region19: #{inverted_residual_forward.1} parent=11 // pred_region
        _
      $region20: #{inverted_residual_forward.1} parent=11 // pred_fallthru
        _
      // Predicated region
      $region21: #{inverted_residual_forward.1} parent=11 // pred_check
        %p212 = pneg %p102
      $region22: #{inverted_residual_forward.1} parent=11 // pred_check_branch
        %214 = sbr.rel (%p212) target = $region24
      $region23: #{inverted_residual_forward.1} parent=11 // pred_region
        _
      $region24: #{inverted_residual_forward.1} parent=11 // pred_fallthru
        _
      // Predicated region
      $region25: #{inverted_residual_forward.1} parent=11 // pred_check
        %p215 = pneg %p123
      $region26: #{inverted_residual_forward.1} parent=11 // pred_check_branch
        %217 = sbr.rel (%p215) target = $region28
      $region27: #{inverted_residual_forward.1} parent=11 // pred_region
        _
      $region28: #{inverted_residual_forward.1} parent=11 // pred_fallthru
        _
      // Predicated region
      $region29: #{inverted_residual_forward.1} parent=11 // pred_check
        %p218 = pneg %p144
      $region30: #{inverted_residual_forward.1} parent=11 // pred_check_branch
        %220 = sbr.rel (%p218) target = $region32
      $region31: #{inverted_residual_forward.1} parent=11 // pred_region
        _
      $region32: #{inverted_residual_forward.1} parent=11 // pred_fallthru
        _
      // Predicated region
      $region33: #{inverted_residual_forward.1} parent=11 // pred_check
        %p221 = pneg %p165
      $region34: #{inverted_residual_forward.1} parent=11 // pred_check_branch
        %223 = sbr.rel (%p221) target = $region36
      $region35: #{inverted_residual_forward.1} parent=11 // pred_region
        _
      $region36: #{inverted_residual_forward.1} parent=11 // pred_fallthru
        _
    $region12: #{inverted_residual_forward.1} parent=5 // pred_fallthru
      _
    %p224 = scmp.lt.s32.totalorder %s13, 2
    // Predicated region
    $region37: #{inverted_residual_forward.1} parent=5 // pred_check
      %p225 = pneg %p224
    $region38: #{inverted_residual_forward.1} parent=5 // pred_check_branch
      %227 = sbr.rel (%p225) target = $region40
    $region39: #{inverted_residual_forward.1} parent=5 // pred_region
      // Predicated region
      $region41: #{inverted_residual_forward.1} parent=39 // pred_check
        %p228 = pneg %p33
      $region42: #{inverted_residual_forward.1} parent=39 // pred_check_branch
        %230 = sbr.rel (%p228) target = $region44
      $region43: #{inverted_residual_forward.1} parent=39 // pred_region
        %p231 = scmp.lt.s32.totalorder %s13, 1
        %s232 = scalar_select %p231, %s13, 1
        %s233 = smul.addr %s232, 32
        %s234 = smul.addr %s233, 8
        %s235 = scalar_lea.vmem %s0, %s234
      $region44: #{inverted_residual_forward.1} parent=39 // pred_fallthru
        _
    $region40: #{inverted_residual_forward.1} parent=5 // pred_fallthru
      _
    %p236 = scmp.le.s32.totalorder 1, %s13
    %p237 = scmp.lt.s32.totalorder %s13, 3
    %p238 = pnand %p236, %p237
    %p239 = pneg %p238
    // Predicated region
    $region45: #{inverted_residual_forward.1} parent=5 // pred_check
      _
    $region46: #{inverted_residual_forward.1} parent=5 // pred_check_branch
      %241 = sbr.rel (%p238) target = $region48
    $region47: #{inverted_residual_forward.1} parent=5 // pred_region
      %s242 = ssub.s32 %s13, 1
      %p243 = scmp.lt.s32.totalorder %s18, 1
      %s244 = scalar_select %p243, %s18, 1
      %s245 = smul.addr %s244, 32
      %s246 = smul.addr %s245, 8
      %s247 = scalar_lea.vmem %s0, %s246
      %p248 = pneg %p39
      %p249 = pneg %p36
      %p250 = pneg %p60
      %p251 = pneg %p57
      %p252 = pneg %p81
      %p253 = pneg %p78
      %p254 = pneg %p102
      %p255 = pneg %p99
      %p256 = pneg %p123
      %p257 = pneg %p120
      %p258 = pneg %p144
      %p259 = pneg %p141
      %p260 = pneg %p165
      %p261 = pneg %p162
      %p262 = pneg %p191
      %p263 = pneg %p188
      %p264 = scmp.lt.s32.totalorder %s18, 1
      %s265 = scalar_select %p264, %s18, 1
      %s266 = smul.addr %s265, 32
      %s267 = smul.addr %s266, 8
      %s268 = scalar_lea.vmem %s7, %s267
      %p269 = scmp.lt.s32.totalorder %s18, 1
      %s270 = scalar_select %p269, %s18, 1
      %s271 = smul.addr %s270, 32
      %s272 = smul.addr %s271, 8
      %s273 = scalar_lea.vmem %s0, %s272
      %p274 = scmp.lt.s32.totalorder %s18, 1
      %s275 = scalar_select %p274, %s18, 1
      %s276 = smul.addr %s275, 32
      %s277 = smul.addr %s276, 8
      %s278 = scalar_lea.vmem %s7, %s277
      %v279 = vld [vmem:[%s273] sm:$0xff]
      %v280 = vld [vmem:[%s273 + $0x8] sm:$0xff]
      %v281 = vld [vmem:[%s273 + $0x10] sm:$0xff]
      %v282 = vld [vmem:[%s273 + $0x18] sm:$0xff]
      %v283 = vld [vmem:[%s273 + $0x20] sm:$0xff]
      %v284 = vld [vmem:[%s273 + $0x28] sm:$0xff]
      %v285 = vld [vmem:[%s273 + $0x30] sm:$0xff]
      %v286 = vld [vmem:[%s273 + $0x38] sm:$0xff]
      %v287 = vld [vmem:[%s273 + $0x40] sm:$0xff]
      %v288 = vld [vmem:[%s273 + $0x48] sm:$0xff]
      %v289 = vld [vmem:[%s273 + $0x50] sm:$0xff]
      %v290 = vld [vmem:[%s273 + $0x58] sm:$0xff]
      %v291 = vld [vmem:[%s273 + $0x60] sm:$0xff]
      %v292 = vld [vmem:[%s273 + $0x68] sm:$0xff]
      %v293 = vld [vmem:[%s273 + $0x70] sm:$0xff]
      %v294 = vld [vmem:[%s273 + $0x78] sm:$0xff]
      %v295 = vld [vmem:[%s273 + $0x80] sm:$0xff]
      %v296 = vld [vmem:[%s273 + $0x88] sm:$0xff]
      %v297 = vld [vmem:[%s273 + $0x90] sm:$0xff]
      %v298 = vld [vmem:[%s273 + $0x98] sm:$0xff]
      %v299 = vld [vmem:[%s273 + $0xa0] sm:$0xff]
      %v300 = vld [vmem:[%s273 + $0xa8] sm:$0xff]
      %v301 = vld [vmem:[%s273 + $0xb0] sm:$0xff]
      %v302 = vld [vmem:[%s273 + $0xb8] sm:$0xff]
      %v303 = vld [vmem:[%s273 + $0xc0] sm:$0xff]
      %v304 = vld [vmem:[%s273 + $0xc8] sm:$0xff]
      %v305 = vld [vmem:[%s273 + $0xd0] sm:$0xff]
      %v306 = vld [vmem:[%s273 + $0xd8] sm:$0xff]
      %v307 = vld [vmem:[%s273 + $0xe0] sm:$0xff]
      %v308 = vld [vmem:[%s273 + $0xe8] sm:$0xff]
      %v309 = vld [vmem:[%s273 + $0xf0] sm:$0xff]
      %v310 = vld [vmem:[%s273 + $0xf8] sm:$0xff]
      %v311 = vld [vmem:[%s1] sm:$0xff]
      %v312 = vld [vmem:[%s2] sm:$0x1]
      %v314 = vperm.slane %v312, 0
      %vm316 = vcmask 64512
      %v318 = vsel %vm316, %v279, 0
      %v321 = vsel %vm316, %v280, 0
      %v324 = vsel %vm316, %v281, 0
      %v327 = vsel %vm316, %v282, 0
      %v330 = vsel %vm316, %v283, 0
      %v333 = vsel %vm316, %v284, 0
      %v336 = vsel %vm316, %v285, 0
      %v339 = vsel %vm316, %v286, 0
      %v342 = vsel %vm316, %v287, 0
      %v345 = vsel %vm316, %v288, 0
      %v348 = vsel %vm316, %v289, 0
      %v351 = vsel %vm316, %v290, 0
      %v354 = vsel %vm316, %v291, 0
      %v357 = vsel %vm316, %v292, 0
      %v360 = vsel %vm316, %v293, 0
      %v363 = vsel %vm316, %v294, 0
      %v366 = vsel %vm316, %v295, 0
      %v369 = vsel %vm316, %v296, 0
      %v372 = vsel %vm316, %v297, 0
      %v375 = vsel %vm316, %v298, 0
      %v378 = vsel %vm316, %v299, 0
      %v381 = vsel %vm316, %v300, 0
      %v384 = vsel %vm316, %v301, 0
      %v387 = vsel %vm316, %v302, 0
      %v390 = vsel %vm316, %v303, 0
      %v393 = vsel %vm316, %v304, 0
      %v396 = vsel %vm316, %v305, 0
      %v399 = vsel %vm316, %v306, 0
      %v402 = vsel %vm316, %v307, 0
      %v405 = vsel %vm316, %v308, 0
      %v408 = vsel %vm316, %v309, 0
      %v411 = vsel %vm316, %v310, 0
      %413 = vmatpush.msra.mxu0 0.0
      %414 = vmatpush.msra.mxu0 0.0
      %415 = vmatpush.msra.mxu0 0.0
      %416 = vmatpush.msra.mxu0 0.0
      %417 = vmatpush.msra.mxu0 0.0
      %418 = vmatpush.msra.mxu0 0.0
      %419 = vmatpush.msra.mxu0 0.0
      %420 = vmatpush.msra.mxu0 0.0
      %421 = vmatpush.msra.mxu0 0.0
      %422 = vmatpush.msra.mxu0 0.0
      %423 = vmatpush.msra.mxu0 0.0
      %424 = vmatpush.msra.mxu0 0.0
      %425 = vmatpush.msra.mxu0 0.0
      %426 = vmatpush.msra.mxu0 0.0
      %427 = vmatpush.msra.mxu0 0.0
      %428 = vmatpush.msra.mxu0 %v311
      %429 = vmatmul.f32.gmra.mxu0 %v318
      %v430 = vpop.f32.mrf.mxu0
      %v431 = vadd.f32 %v314, %v430
      %432 = vmatmul.f32.gmra.mxu0 %v321
      %v433 = vpop.f32.mrf.mxu0
      %v434 = vadd.f32 %v314, %v433
      %435 = vmatmul.f32.gmra.mxu0 %v324
      %v436 = vpop.f32.mrf.mxu0
      %v437 = vadd.f32 %v314, %v436
      %438 = vmatmul.f32.gmra.mxu0 %v327
      %v439 = vpop.f32.mrf.mxu0
      %v440 = vadd.f32 %v314, %v439
      %441 = vmatmul.f32.gmra.mxu0 %v330
      %v442 = vpop.f32.mrf.mxu0
      %v443 = vadd.f32 %v314, %v442
      %444 = vmatmul.f32.gmra.mxu0 %v333
      %v445 = vpop.f32.mrf.mxu0
      %v446 = vadd.f32 %v314, %v445
      %447 = vmatmul.f32.gmra.mxu0 %v336
      %v448 = vpop.f32.mrf.mxu0
      %v449 = vadd.f32 %v314, %v448
      %450 = vmatmul.f32.gmra.mxu0 %v339
      %v451 = vpop.f32.mrf.mxu0
      %v452 = vadd.f32 %v314, %v451
      %453 = vmatmul.f32.gmra.mxu0 %v342
      %v454 = vpop.f32.mrf.mxu0
      %v455 = vadd.f32 %v314, %v454
      %456 = vmatmul.f32.gmra.mxu0 %v345
      %v457 = vpop.f32.mrf.mxu0
      %v458 = vadd.f32 %v314, %v457
      %459 = vmatmul.f32.gmra.mxu0 %v348
      %v460 = vpop.f32.mrf.mxu0
      %v461 = vadd.f32 %v314, %v460
      %462 = vmatmul.f32.gmra.mxu0 %v351
      %v463 = vpop.f32.mrf.mxu0
      %v464 = vadd.f32 %v314, %v463
      %465 = vmatmul.f32.gmra.mxu0 %v354
      %v466 = vpop.f32.mrf.mxu0
      %v467 = vadd.f32 %v314, %v466
      %468 = vmatmul.f32.gmra.mxu0 %v357
      %v469 = vpop.f32.mrf.mxu0
      %v470 = vadd.f32 %v314, %v469
      %471 = vmatmul.f32.gmra.mxu0 %v360
      %v472 = vpop.f32.mrf.mxu0
      %v473 = vadd.f32 %v314, %v472
      %474 = vmatmul.f32.gmra.mxu0 %v363
      %v475 = vpop.f32.mrf.mxu0
      %v476 = vadd.f32 %v314, %v475
      %477 = vmatmul.f32.gmra.mxu0 %v366
      %v478 = vpop.f32.mrf.mxu0
      %v479 = vadd.f32 %v314, %v478
      %480 = vmatmul.f32.gmra.mxu0 %v369
      %v481 = vpop.f32.mrf.mxu0
      %v482 = vadd.f32 %v314, %v481
      %483 = vmatmul.f32.gmra.mxu0 %v372
      %v484 = vpop.f32.mrf.mxu0
      %v485 = vadd.f32 %v314, %v484
      %486 = vmatmul.f32.gmra.mxu0 %v375
      %v487 = vpop.f32.mrf.mxu0
      %v488 = vadd.f32 %v314, %v487
      %489 = vmatmul.f32.gmra.mxu0 %v378
      %v490 = vpop.f32.mrf.mxu0
      %v491 = vadd.f32 %v314, %v490
      %492 = vmatmul.f32.gmra.mxu0 %v381
      %v493 = vpop.f32.mrf.mxu0
      %v494 = vadd.f32 %v314, %v493
      %495 = vmatmul.f32.gmra.mxu0 %v384
      %v496 = vpop.f32.mrf.mxu0
      %v497 = vadd.f32 %v314, %v496
      %498 = vmatmul.f32.gmra.mxu0 %v387
      %v499 = vpop.f32.mrf.mxu0
      %v500 = vadd.f32 %v314, %v499
      %501 = vmatmul.f32.gmra.mxu0 %v390
      %v502 = vpop.f32.mrf.mxu0
      %v503 = vadd.f32 %v314, %v502
      %504 = vmatmul.f32.gmra.mxu0 %v393
      %v505 = vpop.f32.mrf.mxu0
      %v506 = vadd.f32 %v314, %v505
      %507 = vmatmul.f32.gmra.mxu0 %v396
      %v508 = vpop.f32.mrf.mxu0
      %v509 = vadd.f32 %v314, %v508
      %510 = vmatmul.f32.gmra.mxu0 %v399
      %v511 = vpop.f32.mrf.mxu0
      %v512 = vadd.f32 %v314, %v511
      %513 = vmatmul.f32.gmra.mxu0 %v402
      %v514 = vpop.f32.mrf.mxu0
      %v515 = vadd.f32 %v314, %v514
      %516 = vmatmul.f32.gmra.mxu0 %v405
      %v517 = vpop.f32.mrf.mxu0
      %v518 = vadd.f32 %v314, %v517
      %519 = vmatmul.f32.gmra.mxu0 %v408
      %v520 = vpop.f32.mrf.mxu0
      %v521 = vadd.f32 %v314, %v520
      %522 = vmatmul.f32.gmra.mxu0 %v411
      %v523 = vpop.f32.mrf.mxu0
      %v524 = vadd.f32 %v314, %v523
      %525 = vdwg.mxu0
      %v526 = vmax.f32 %v431, 0.0
      %v527 = vmax.f32 %v434, 0.0
      %v528 = vmax.f32 %v437, 0.0
      %v529 = vmax.f32 %v440, 0.0
      %v530 = vmax.f32 %v443, 0.0
      %v531 = vmax.f32 %v446, 0.0
      %v532 = vmax.f32 %v449, 0.0
      %v533 = vmax.f32 %v452, 0.0
      %v534 = vmax.f32 %v455, 0.0
      %v535 = vmax.f32 %v458, 0.0
      %v536 = vmax.f32 %v461, 0.0
      %v537 = vmax.f32 %v464, 0.0
      %v538 = vmax.f32 %v467, 0.0
      %v539 = vmax.f32 %v470, 0.0
      %v540 = vmax.f32 %v473, 0.0
      %v541 = vmax.f32 %v476, 0.0
      %v542 = vmax.f32 %v479, 0.0
      %v543 = vmax.f32 %v482, 0.0
      %v544 = vmax.f32 %v485, 0.0
      %v545 = vmax.f32 %v488, 0.0
      %v546 = vmax.f32 %v491, 0.0
      %v547 = vmax.f32 %v494, 0.0
      %v548 = vmax.f32 %v497, 0.0
      %v549 = vmax.f32 %v500, 0.0
      %v550 = vmax.f32 %v503, 0.0
      %v551 = vmax.f32 %v506, 0.0
      %v552 = vmax.f32 %v509, 0.0
      %v553 = vmax.f32 %v512, 0.0
      %v554 = vmax.f32 %v515, 0.0
      %v555 = vmax.f32 %v518, 0.0
      %v556 = vmax.f32 %v521, 0.0
      %v557 = vmax.f32 %v524, 0.0
      %558 = vst.msk [vmem:[#allocation2] sm:$0xff] %vm316, 0.0
      %559 = vst.msk [vmem:[#allocation2 + $0x8] sm:$0xff] %vm316, 0.0
      %vm560 = vcmask 58368
      %561 = vst.msk [vmem:[#allocation2 + $0x10] sm:$0x3] %vm560, 0.0
      %s562 = scalar_lea.vmem [#allocation2], 408
      %563 = vst.msk [vmem:[%s562] sm:$0xff] %vm316, 0.0
      %564 = vst.msk [vmem:[%s562 + $0x8] sm:$0xff] %vm316, 0.0
      %565 = vst.msk [vmem:[%s562 + $0x10] sm:$0x3] %vm560, 0.0
      %vm566 = vcmask 57344
      %567 = vst.msk [vmem:[#allocation2] sm:$0x1] %vm566, 0.0
      %568 = vst.msk [vmem:[#allocation2 + $0x18] sm:$0x1] %vm566, 0.0
      %569 = vst.msk [vmem:[#allocation2 + $0x30] sm:$0x1] %vm566, 0.0
      %570 = vst.msk [vmem:[#allocation2 + $0x48] sm:$0x1] %vm566, 0.0
      %571 = vst.msk [vmem:[#allocation2 + $0x60] sm:$0x1] %vm566, 0.0
      %572 = vst.msk [vmem:[#allocation2 + $0x78] sm:$0x1] %vm566, 0.0
      %573 = vst.msk [vmem:[#allocation2 + $0x90] sm:$0x1] %vm566, 0.0
      %574 = vst.msk [vmem:[#allocation2 + $0xa8] sm:$0x1] %vm566, 0.0
      %575 = vst.msk [vmem:[#allocation2 + $0xc0] sm:$0x1] %vm566, 0.0
      %576 = vst.msk [vmem:[#allocation2 + $0xd8] sm:$0x1] %vm566, 0.0
      %577 = vst.msk [vmem:[#allocation2 + $0xf0] sm:$0x1] %vm566, 0.0
      %578 = vst.msk [vmem:[#allocation2 + $0x108] sm:$0x1] %vm566, 0.0
      %579 = vst.msk [vmem:[#allocation2 + $0x120] sm:$0x1] %vm566, 0.0
      %580 = vst.msk [vmem:[#allocation2 + $0x138] sm:$0x1] %vm566, 0.0
      %581 = vst.msk [vmem:[#allocation2 + $0x150] sm:$0x1] %vm566, 0.0
      %582 = vst.msk [vmem:[#allocation2 + $0x168] sm:$0x1] %vm566, 0.0
      %583 = vst.msk [vmem:[#allocation2 + $0x180] sm:$0x1] %vm566, 0.0
      %584 = vst.msk [vmem:[#allocation2 + $0x198] sm:$0x1] %vm566, 0.0
      %585 = vst.msk [vmem:[#allocation2 + $0x11] sm:$0x1] %vm566, 0.0
      %586 = vst.msk [vmem:[#allocation2 + $0x29] sm:$0x1] %vm566, 0.0
      %587 = vst.msk [vmem:[#allocation2 + $0x41] sm:$0x1] %vm566, 0.0
      %588 = vst.msk [vmem:[#allocation2 + $0x59] sm:$0x1] %vm566, 0.0
      %589 = vst.msk [vmem:[#allocation2 + $0x71] sm:$0x1] %vm566, 0.0
      %590 = vst.msk [vmem:[#allocation2 + $0x89] sm:$0x1] %vm566, 0.0
      %591 = vst.msk [vmem:[#allocation2 + $0xa1] sm:$0x1] %vm566, 0.0
      %592 = vst.msk [vmem:[#allocation2 + $0xb9] sm:$0x1] %vm566, 0.0
      %593 = vst.msk [vmem:[#allocation2 + $0xd1] sm:$0x1] %vm566, 0.0
      %594 = vst.msk [vmem:[#allocation2 + $0xe9] sm:$0x1] %vm566, 0.0
      %595 = vst.msk [vmem:[#allocation2 + $0x101] sm:$0x1] %vm566, 0.0
      %596 = vst.msk [vmem:[#allocation2 + $0x119] sm:$0x1] %vm566, 0.0
      %597 = vst.msk [vmem:[#allocation2 + $0x131] sm:$0x1] %vm566, 0.0
      %598 = vst.msk [vmem:[#allocation2 + $0x149] sm:$0x1] %vm566, 0.0
      %599 = vst.msk [vmem:[#allocation2 + $0x161] sm:$0x1] %vm566, 0.0
      %600 = vst.msk [vmem:[#allocation2 + $0x179] sm:$0x1] %vm566, 0.0
      %601 = vst.msk [vmem:[#allocation2 + $0x191] sm:$0x1] %vm566, 0.0
      %602 = vst.msk [vmem:[#allocation2 + $0x1a9] sm:$0x1] %vm566, 0.0
      %s603 = scalar_lea.vmem [#allocation2], 24
      %604 = vst.msk [vmem:[%s603 + $0x1] sm:$0xff] %vm316, %v526
      %605 = vst.msk [vmem:[%s603 + $0x9] sm:$0xff] %vm316, %v527
      %606 = vst.msk [vmem:[%s603 + $0x19] sm:$0xff] %vm316, %v528
      %607 = vst.msk [vmem:[%s603 + $0x21] sm:$0xff] %vm316, %v529
      %608 = vst.msk [vmem:[%s603 + $0x31] sm:$0xff] %vm316, %v530
      %609 = vst.msk [vmem:[%s603 + $0x39] sm:$0xff] %vm316, %v531
      %610 = vst.msk [vmem:[%s603 + $0x49] sm:$0xff] %vm316, %v532
      %611 = vst.msk [vmem:[%s603 + $0x51] sm:$0xff] %vm316, %v533
      %612 = vst.msk [vmem:[%s603 + $0x61] sm:$0xff] %vm316, %v534
      %613 = vst.msk [vmem:[%s603 + $0x69] sm:$0xff] %vm316, %v535
      %614 = vst.msk [vmem:[%s603 + $0x79] sm:$0xff] %vm316, %v536
      %615 = vst.msk [vmem:[%s603 + $0x81] sm:$0xff] %vm316, %v537
      %616 = vst.msk [vmem:[%s603 + $0x91] sm:$0xff] %vm316, %v538
      %617 = vst.msk [vmem:[%s603 + $0x99] sm:$0xff] %vm316, %v539
      %618 = vst.msk [vmem:[%s603 + $0xa9] sm:$0xff] %vm316, %v540
      %619 = vst.msk [vmem:[%s603 + $0xb1] sm:$0xff] %vm316, %v541
      %620 = vst.msk [vmem:[%s603 + $0xc1] sm:$0xff] %vm316, %v542
      %621 = vst.msk [vmem:[%s603 + $0xc9] sm:$0xff] %vm316, %v543
      %622 = vst.msk [vmem:[%s603 + $0xd9] sm:$0xff] %vm316, %v544
      %623 = vst.msk [vmem:[%s603 + $0xe1] sm:$0xff] %vm316, %v545
      %624 = vst.msk [vmem:[%s603 + $0xf1] sm:$0xff] %vm316, %v546
      %625 = vst.msk [vmem:[%s603 + $0xf9] sm:$0xff] %vm316, %v547
      %626 = vst.msk [vmem:[%s603 + $0x109] sm:$0xff] %vm316, %v548
      %627 = vst.msk [vmem:[%s603 + $0x111] sm:$0xff] %vm316, %v549
      %628 = vst.msk [vmem:[%s603 + $0x121] sm:$0xff] %vm316, %v550
      %629 = vst.msk [vmem:[%s603 + $0x129] sm:$0xff] %vm316, %v551
      %630 = vst.msk [vmem:[%s603 + $0x139] sm:$0xff] %vm316, %v552
      %631 = vst.msk [vmem:[%s603 + $0x141] sm:$0xff] %vm316, %v553
      %632 = vst.msk [vmem:[%s603 + $0x151] sm:$0xff] %vm316, %v554
      %633 = vst.msk [vmem:[%s603 + $0x159] sm:$0xff] %vm316, %v555
      %634 = vst.msk [vmem:[%s603 + $0x169] sm:$0xff] %vm316, %v556
      %635 = vst.msk [vmem:[%s603 + $0x171] sm:$0xff] %vm316, %v557
      %v636 = vld [vmem:[#allocation2] sm:$0xff]
      %v637 = vld [vmem:[#allocation2 + $0x8] sm:$0xff]
      %v638 = vld [vmem:[#allocation2 + $0x18] sm:$0xff]
      %v639 = vld [vmem:[#allocation2 + $0x20] sm:$0xff]
      %v640 = vld [vmem:[#allocation2 + $0x30] sm:$0xff]
      %v641 = vld [vmem:[#allocation2 + $0x38] sm:$0xff]
      %v642 = vld [vmem:[#allocation2 + $0x48] sm:$0xff]
      %v643 = vld [vmem:[#allocation2 + $0x50] sm:$0xff]
      %v644 = vld [vmem:[#allocation2 + $0x60] sm:$0xff]
      %v645 = vld [vmem:[#allocation2 + $0x68] sm:$0xff]
      %v646 = vld [vmem:[#allocation2 + $0x78] sm:$0xff]
      %v647 = vld [vmem:[#allocation2 + $0x80] sm:$0xff]
      %v648 = vld [vmem:[#allocation2 + $0x90] sm:$0xff]
      %v649 = vld [vmem:[#allocation2 + $0x98] sm:$0xff]
      %v650 = vld [vmem:[#allocation2 + $0xa8] sm:$0xff]
      %v651 = vld [vmem:[#allocation2 + $0xb0] sm:$0xff]
      %v652 = vld [vmem:[#allocation2 + $0xc0] sm:$0xff]
      %v653 = vld [vmem:[#allocation2 + $0xc8] sm:$0xff]
      %v654 = vld [vmem:[#allocation2 + $0xd8] sm:$0xff]
      %v655 = vld [vmem:[#allocation2 + $0xe0] sm:$0xff]
      %v656 = vld [vmem:[#allocation2 + $0xf0] sm:$0xff]
      %v657 = vld [vmem:[#allocation2 + $0xf8] sm:$0xff]
      %v658 = vld [vmem:[#allocation2 + $0x108] sm:$0xff]
      %v659 = vld [vmem:[#allocation2 + $0x110] sm:$0xff]
      %v660 = vld [vmem:[#allocation2 + $0x120] sm:$0xff]
      %v661 = vld [vmem:[#allocation2 + $0x128] sm:$0xff]
      %v662 = vld [vmem:[#allocation2 + $0x138] sm:$0xff]
      %v663 = vld [vmem:[#allocation2 + $0x140] sm:$0xff]
      %v664 = vld [vmem:[#allocation2 + $0x150] sm:$0xff]
      %v665 = vld [vmem:[#allocation2 + $0x158] sm:$0xff]
      %v666 = vld [vmem:[#allocation2 + $0x168] sm:$0xff]
      %v667 = vld [vmem:[#allocation2 + $0x170] sm:$0xff]
      %v668 = vld [vmem:[%s3] sm:$0x1]
      %v669 = vperm.slane %v668, 0
      %v670 = vmul.f32 %v636, %v669
      %v671 = vmul.f32 %v637, %v669
      %v672 = vmul.f32 %v638, %v669
      %v673 = vmul.f32 %v639, %v669
      %v674 = vmul.f32 %v640, %v669
      %v675 = vmul.f32 %v641, %v669
      %v676 = vmul.f32 %v642, %v669
      %v677 = vmul.f32 %v643, %v669
      %v678 = vmul.f32 %v644, %v669
      %v679 = vmul.f32 %v645, %v669
      %v680 = vmul.f32 %v646, %v669
      %v681 = vmul.f32 %v647, %v669
      %v682 = vmul.f32 %v648, %v669
      %v683 = vmul.f32 %v649, %v669
      %v684 = vmul.f32 %v650, %v669
      %v685 = vmul.f32 %v651, %v669
      %v686 = vmul.f32 %v652, %v669
      %v687 = vmul.f32 %v653, %v669
      %v688 = vmul.f32 %v654, %v669
      %v689 = vmul.f32 %v655, %v669
      %v690 = vmul.f32 %v656, %v669
      %v691 = vmul.f32 %v657, %v669
      %v692 = vmul.f32 %v658, %v669
      %v693 = vmul.f32 %v659, %v669
      %v694 = vmul.f32 %v660, %v669
      %v695 = vmul.f32 %v661, %v669
      %v696 = vmul.f32 %v662, %v669
      %v697 = vmul.f32 %v663, %v669
      %v698 = vmul.f32 %v664, %v669
      %v699 = vmul.f32 %v665, %v669
      %v700 = vmul.f32 %v666, %v669
      %v701 = vmul.f32 %v667, %v669
      %v702 = vld [vmem:[#allocation2 + $0x1] sm:$0xff]
      %v703 = vld [vmem:[#allocation2 + $0x9] sm:$0xff]
      %v704 = vld [vmem:[#allocation2 + $0x19] sm:$0xff]
      %v705 = vld [vmem:[#allocation2 + $0x21] sm:$0xff]
      %v706 = vld [vmem:[#allocation2 + $0x31] sm:$0xff]
      %v707 = vld [vmem:[#allocation2 + $0x39] sm:$0xff]
      %v708 = vld [vmem:[#allocation2 + $0x49] sm:$0xff]
      %v709 = vld [vmem:[#allocation2 + $0x51] sm:$0xff]
      %v710 = vld [vmem:[#allocation2 + $0x61] sm:$0xff]
      %v711 = vld [vmem:[#allocation2 + $0x69] sm:$0xff]
      %v712 = vld [vmem:[#allocation2 + $0x79] sm:$0xff]
      %v713 = vld [vmem:[#allocation2 + $0x81] sm:$0xff]
      %v714 = vld [vmem:[#allocation2 + $0x91] sm:$0xff]
      %v715 = vld [vmem:[#allocation2 + $0x99] sm:$0xff]
      %v716 = vld [vmem:[#allocation2 + $0xa9] sm:$0xff]
      %v717 = vld [vmem:[#allocation2 + $0xb1] sm:$0xff]
      %v718 = vld [vmem:[#allocation2 + $0xc1] sm:$0xff]
      %v719 = vld [vmem:[#allocation2 + $0xc9] sm:$0xff]
      %v720 = vld [vmem:[#allocation2 + $0xd9] sm:$0xff]
      %v721 = vld [vmem:[#allocation2 + $0xe1] sm:$0xff]
      %v722 = vld [vmem:[#allocation2 + $0xf1] sm:$0xff]
      %v723 = vld [vmem:[#allocation2 + $0xf9] sm:$0xff]
      %v724 = vld [vmem:[#allocation2 + $0x109] sm:$0xff]
      %v725 = vld [vmem:[#allocation2 + $0x111] sm:$0xff]
      %v726 = vld [vmem:[#allocation2 + $0x121] sm:$0xff]
      %v727 = vld [vmem:[#allocation2 + $0x129] sm:$0xff]
      %v728 = vld [vmem:[#allocation2 + $0x139] sm:$0xff]
      %v729 = vld [vmem:[#allocation2 + $0x141] sm:$0xff]
      %v730 = vld [vmem:[#allocation2 + $0x151] sm:$0xff]
      %v731 = vld [vmem:[#allocation2 + $0x159] sm:$0xff]
      %v732 = vld [vmem:[#allocation2 + $0x169] sm:$0xff]
      %v733 = vld [vmem:[#allocation2 + $0x171] sm:$0xff]
      %v734 = vld [vmem:[%s3 + $0x1] sm:$0x1]
      %v735 = vperm.slane %v734, 0
      %v736 = vmul.f32 %v702, %v735
      %v737 = vmul.f32 %v703, %v735
      %v738 = vmul.f32 %v704, %v735
      %v739 = vmul.f32 %v705, %v735
      %v740 = vmul.f32 %v706, %v735
      %v741 = vmul.f32 %v707, %v735
      %v742 = vmul.f32 %v708, %v735
      %v743 = vmul.f32 %v709, %v735
      %v744 = vmul.f32 %v710, %v735
      %v745 = vmul.f32 %v711, %v735
      %v746 = vmul.f32 %v712, %v735
      %v747 = vmul.f32 %v713, %v735
      %v748 = vmul.f32 %v714, %v735
      %v749 = vmul.f32 %v715, %v735
      %v750 = vmul.f32 %v716, %v735
      %v751 = vmul.f32 %v717, %v735
      %v752 = vmul.f32 %v718, %v735
      %v753 = vmul.f32 %v719, %v735
      %v754 = vmul.f32 %v720, %v735
      %v755 = vmul.f32 %v721, %v735
      %v756 = vmul.f32 %v722, %v735
      %v757 = vmul.f32 %v723, %v735
      %v758 = vmul.f32 %v724, %v735
      %v759 = vmul.f32 %v725, %v735
      %v760 = vmul.f32 %v726, %v735
      %v761 = vmul.f32 %v727, %v735
      %v762 = vmul.f32 %v728, %v735
      %v763 = vmul.f32 %v729, %v735
      %v764 = vmul.f32 %v730, %v735
      %v765 = vmul.f32 %v731, %v735
      %v766 = vmul.f32 %v732, %v735
      %v767 = vmul.f32 %v733, %v735
      %v768 = vadd.f32 %v670, %v736
      %v769 = vadd.f32 %v671, %v737
      %v770 = vadd.f32 %v672, %v738
      %v771 = vadd.f32 %v673, %v739
      %v772 = vadd.f32 %v674, %v740
      %v773 = vadd.f32 %v675, %v741
      %v774 = vadd.f32 %v676, %v742
      %v775 = vadd.f32 %v677, %v743
      %v776 = vadd.f32 %v678, %v744
      %v777 = vadd.f32 %v679, %v745
      %v778 = vadd.f32 %v680, %v746
      %v779 = vadd.f32 %v681, %v747
      %v780 = vadd.f32 %v682, %v748
      %v781 = vadd.f32 %v683, %v749
      %v782 = vadd.f32 %v684, %v750
      %v783 = vadd.f32 %v685, %v751
      %v784 = vadd.f32 %v686, %v752
      %v785 = vadd.f32 %v687, %v753
      %v786 = vadd.f32 %v688, %v754
      %v787 = vadd.f32 %v689, %v755
      %v788 = vadd.f32 %v690, %v756
      %v789 = vadd.f32 %v691, %v757
      %v790 = vadd.f32 %v692, %v758
      %v791 = vadd.f32 %v693, %v759
      %v792 = vadd.f32 %v694, %v760
      %v793 = vadd.f32 %v695, %v761
      %v794 = vadd.f32 %v696, %v762
      %v795 = vadd.f32 %v697, %v763
      %v796 = vadd.f32 %v698, %v764
      %v797 = vadd.f32 %v699, %v765
      %v798 = vadd.f32 %v700, %v766
      %v799 = vadd.f32 %v701, %v767
      %v800 = vld [vmem:[#allocation2 + $0x2] sm:$0xff]
      %v801 = vld [vmem:[#allocation2 + $0xa] sm:$0xff]
      %v802 = vld [vmem:[#allocation2 + $0x1a] sm:$0xff]
      %v803 = vld [vmem:[#allocation2 + $0x22] sm:$0xff]
      %v804 = vld [vmem:[#allocation2 + $0x32] sm:$0xff]
      %v805 = vld [vmem:[#allocation2 + $0x3a] sm:$0xff]
      %v806 = vld [vmem:[#allocation2 + $0x4a] sm:$0xff]
      %v807 = vld [vmem:[#allocation2 + $0x52] sm:$0xff]
      %v808 = vld [vmem:[#allocation2 + $0x62] sm:$0xff]
      %v809 = vld [vmem:[#allocation2 + $0x6a] sm:$0xff]
      %v810 = vld [vmem:[#allocation2 + $0x7a] sm:$0xff]
      %v811 = vld [vmem:[#allocation2 + $0x82] sm:$0xff]
      %v812 = vld [vmem:[#allocation2 + $0x92] sm:$0xff]
      %v813 = vld [vmem:[#allocation2 + $0x9a] sm:$0xff]
      %v814 = vld [vmem:[#allocation2 + $0xaa] sm:$0xff]
      %v815 = vld [vmem:[#allocation2 + $0xb2] sm:$0xff]
      %v816 = vld [vmem:[#allocation2 + $0xc2] sm:$0xff]
      %v817 = vld [vmem:[#allocation2 + $0xca] sm:$0xff]
      %v818 = vld [vmem:[#allocation2 + $0xda] sm:$0xff]
      %v819 = vld [vmem:[#allocation2 + $0xe2] sm:$0xff]
      %v820 = vld [vmem:[#allocation2 + $0xf2] sm:$0xff]
      %v821 = vld [vmem:[#allocation2 + $0xfa] sm:$0xff]
      %v822 = vld [vmem:[#allocation2 + $0x10a] sm:$0xff]
      %v823 = vld [vmem:[#allocation2 + $0x112] sm:$0xff]
      %v824 = vld [vmem:[#allocation2 + $0x122] sm:$0xff]
      %v825 = vld [vmem:[#allocation2 + $0x12a] sm:$0xff]
      %v826 = vld [vmem:[#allocation2 + $0x13a] sm:$0xff]
      %v827 = vld [vmem:[#allocation2 + $0x142] sm:$0xff]
      %v828 = vld [vmem:[#allocation2 + $0x152] sm:$0xff]
      %v829 = vld [vmem:[#allocation2 + $0x15a] sm:$0xff]
      %v830 = vld [vmem:[#allocation2 + $0x16a] sm:$0xff]
      %v831 = vld [vmem:[#allocation2 + $0x172] sm:$0xff]
      %v832 = vld [vmem:[%s3 + $0x2] sm:$0x1]
      %v833 = vperm.slane %v832, 0
      %v834 = vmul.f32 %v800, %v833
      %v835 = vmul.f32 %v801, %v833
      %v836 = vmul.f32 %v802, %v833
      %v837 = vmul.f32 %v803, %v833
      %v838 = vmul.f32 %v804, %v833
      %v839 = vmul.f32 %v805, %v833
      %v840 = vmul.f32 %v806, %v833
      %v841 = vmul.f32 %v807, %v833
      %v842 = vmul.f32 %v808, %v833
      %v843 = vmul.f32 %v809, %v833
      %v844 = vmul.f32 %v810, %v833
      %v845 = vmul.f32 %v811, %v833
      %v846 = vmul.f32 %v812, %v833
      %v847 = vmul.f32 %v813, %v833
      %v848 = vmul.f32 %v814, %v833
      %v849 = vmul.f32 %v815, %v833
      %v850 = vmul.f32 %v816, %v833
      %v851 = vmul.f32 %v817, %v833
      %v852 = vmul.f32 %v818, %v833
      %v853 = vmul.f32 %v819, %v833
      %v854 = vmul.f32 %v820, %v833
      %v855 = vmul.f32 %v821, %v833
      %v856 = vmul.f32 %v822, %v833
      %v857 = vmul.f32 %v823, %v833
      %v858 = vmul.f32 %v824, %v833
      %v859 = vmul.f32 %v825, %v833
      %v860 = vmul.f32 %v826, %v833
      %v861 = vmul.f32 %v827, %v833
      %v862 = vmul.f32 %v828, %v833
      %v863 = vmul.f32 %v829, %v833
      %v864 = vmul.f32 %v830, %v833
      %v865 = vmul.f32 %v831, %v833
      %v866 = vadd.f32 %v768, %v834
      %v867 = vadd.f32 %v769, %v835
      %v868 = vadd.f32 %v770, %v836
      %v869 = vadd.f32 %v771, %v837
      %v870 = vadd.f32 %v772, %v838
      %v871 = vadd.f32 %v773, %v839
      %v872 = vadd.f32 %v774, %v840
      %v873 = vadd.f32 %v775, %v841
      %v874 = vadd.f32 %v776, %v842
      %v875 = vadd.f32 %v777, %v843
      %v876 = vadd.f32 %v778, %v844
      %v877 = vadd.f32 %v779, %v845
      %v878 = vadd.f32 %v780, %v846
      %v879 = vadd.f32 %v781, %v847
      %v880 = vadd.f32 %v782, %v848
      %v881 = vadd.f32 %v783, %v849
      %v882 = vadd.f32 %v784, %v850
      %v883 = vadd.f32 %v785, %v851
      %v884 = vadd.f32 %v786, %v852
      %v885 = vadd.f32 %v787, %v853
      %v886 = vadd.f32 %v788, %v854
      %v887 = vadd.f32 %v789, %v855
      %v888 = vadd.f32 %v790, %v856
      %v889 = vadd.f32 %v791, %v857
      %v890 = vadd.f32 %v792, %v858
      %v891 = vadd.f32 %v793, %v859
      %v892 = vadd.f32 %v794, %v860
      %v893 = vadd.f32 %v795, %v861
      %v894 = vadd.f32 %v796, %v862
      %v895 = vadd.f32 %v797, %v863
      %v896 = vadd.f32 %v798, %v864
      %v897 = vadd.f32 %v799, %v865
      %v898 = vld [vmem:[%s603] sm:$0xff]
      %v899 = vld [vmem:[%s603 + $0x8] sm:$0xff]
      %v900 = vld [vmem:[%s603 + $0x18] sm:$0xff]
      %v901 = vld [vmem:[%s603 + $0x20] sm:$0xff]
      %v902 = vld [vmem:[%s603 + $0x30] sm:$0xff]
      %v903 = vld [vmem:[%s603 + $0x38] sm:$0xff]
      %v904 = vld [vmem:[%s603 + $0x48] sm:$0xff]
      %v905 = vld [vmem:[%s603 + $0x50] sm:$0xff]
      %v906 = vld [vmem:[%s603 + $0x60] sm:$0xff]
      %v907 = vld [vmem:[%s603 + $0x68] sm:$0xff]
      %v908 = vld [vmem:[%s603 + $0x78] sm:$0xff]
      %v909 = vld [vmem:[%s603 + $0x80] sm:$0xff]
      %v910 = vld [vmem:[%s603 + $0x90] sm:$0xff]
      %v911 = vld [vmem:[%s603 + $0x98] sm:$0xff]
      %v912 = vld [vmem:[%s603 + $0xa8] sm:$0xff]
      %v913 = vld [vmem:[%s603 + $0xb0] sm:$0xff]
      %v914 = vld [vmem:[%s603 + $0xc0] sm:$0xff]
      %v915 = vld [vmem:[%s603 + $0xc8] sm:$0xff]
      %v916 = vld [vmem:[%s603 + $0xd8] sm:$0xff]
      %v917 = vld [vmem:[%s603 + $0xe0] sm:$0xff]
      %v918 = vld [vmem:[%s603 + $0xf0] sm:$0xff]
      %v919 = vld [vmem:[%s603 + $0xf8] sm:$0xff]
      %v920 = vld [vmem:[%s603 + $0x108] sm:$0xff]
      %v921 = vld [vmem:[%s603 + $0x110] sm:$0xff]
      %v922 = vld [vmem:[%s603 + $0x120] sm:$0xff]
      %v923 = vld [vmem:[%s603 + $0x128] sm:$0xff]
      %v924 = vld [vmem:[%s603 + $0x138] sm:$0xff]
      %v925 = vld [vmem:[%s603 + $0x140] sm:$0xff]
      %v926 = vld [vmem:[%s603 + $0x150] sm:$0xff]
      %v927 = vld [vmem:[%s603 + $0x158] sm:$0xff]
      %v928 = vld [vmem:[%s603 + $0x168] sm:$0xff]
      %v929 = vld [vmem:[%s603 + $0x170] sm:$0xff]
      %v930 = vld [vmem:[%s3 + $0x3] sm:$0x1]
      %v931 = vperm.slane %v930, 0
      %v932 = vmul.f32 %v898, %v931
      %v933 = vmul.f32 %v899, %v931
      %v934 = vmul.f32 %v900, %v931
      %v935 = vmul.f32 %v901, %v931
      %v936 = vmul.f32 %v902, %v931
      %v937 = vmul.f32 %v903, %v931
      %v938 = vmul.f32 %v904, %v931
      %v939 = vmul.f32 %v905, %v931
      %v940 = vmul.f32 %v906, %v931
      %v941 = vmul.f32 %v907, %v931
      %v942 = vmul.f32 %v908, %v931
      %v943 = vmul.f32 %v909, %v931
      %v944 = vmul.f32 %v910, %v931
      %v945 = vmul.f32 %v911, %v931
      %v946 = vmul.f32 %v912, %v931
      %v947 = vmul.f32 %v913, %v931
      %v948 = vmul.f32 %v914, %v931
      %v949 = vmul.f32 %v915, %v931
      %v950 = vmul.f32 %v916, %v931
      %v951 = vmul.f32 %v917, %v931
      %v952 = vmul.f32 %v918, %v931
      %v953 = vmul.f32 %v919, %v931
      %v954 = vmul.f32 %v920, %v931
      %v955 = vmul.f32 %v921, %v931
      %v956 = vmul.f32 %v922, %v931
      %v957 = vmul.f32 %v923, %v931
      %v958 = vmul.f32 %v924, %v931
      %v959 = vmul.f32 %v925, %v931
      %v960 = vmul.f32 %v926, %v931
      %v961 = vmul.f32 %v927, %v931
      %v962 = vmul.f32 %v928, %v931
      %v963 = vmul.f32 %v929, %v931
      %v964 = vadd.f32 %v866, %v932
      %v965 = vadd.f32 %v867, %v933
      %v966 = vadd.f32 %v868, %v934
      %v967 = vadd.f32 %v869, %v935
      %v968 = vadd.f32 %v870, %v936
      %v969 = vadd.f32 %v871, %v937
      %v970 = vadd.f32 %v872, %v938
      %v971 = vadd.f32 %v873, %v939
      %v972 = vadd.f32 %v874, %v940
      %v973 = vadd.f32 %v875, %v941
      %v974 = vadd.f32 %v876, %v942
      %v975 = vadd.f32 %v877, %v943
      %v976 = vadd.f32 %v878, %v944
      %v977 = vadd.f32 %v879, %v945
      %v978 = vadd.f32 %v880, %v946
      %v979 = vadd.f32 %v881, %v947
      %v980 = vadd.f32 %v882, %v948
      %v981 = vadd.f32 %v883, %v949
      %v982 = vadd.f32 %v884, %v950
      %v983 = vadd.f32 %v885, %v951
      %v984 = vadd.f32 %v886, %v952
      %v985 = vadd.f32 %v887, %v953
      %v986 = vadd.f32 %v888, %v954
      %v987 = vadd.f32 %v889, %v955
      %v988 = vadd.f32 %v890, %v956
      %v989 = vadd.f32 %v891, %v957
      %v990 = vadd.f32 %v892, %v958
      %v991 = vadd.f32 %v893, %v959
      %v992 = vadd.f32 %v894, %v960
      %v993 = vadd.f32 %v895, %v961
      %v994 = vadd.f32 %v896, %v962
      %v995 = vadd.f32 %v897, %v963
      %v996 = vld [vmem:[%s603 + $0x1] sm:$0xff]
      %v997 = vld [vmem:[%s603 + $0x9] sm:$0xff]
      %v998 = vld [vmem:[%s603 + $0x19] sm:$0xff]
      %v999 = vld [vmem:[%s603 + $0x21] sm:$0xff]
      %v1000 = vld [vmem:[%s603 + $0x31] sm:$0xff]
      %v1001 = vld [vmem:[%s603 + $0x39] sm:$0xff]
      %v1002 = vld [vmem:[%s603 + $0x49] sm:$0xff]
      %v1003 = vld [vmem:[%s603 + $0x51] sm:$0xff]
      %v1004 = vld [vmem:[%s603 + $0x61] sm:$0xff]
      %v1005 = vld [vmem:[%s603 + $0x69] sm:$0xff]
      %v1006 = vld [vmem:[%s603 + $0x79] sm:$0xff]
      %v1007 = vld [vmem:[%s603 + $0x81] sm:$0xff]
      %v1008 = vld [vmem:[%s603 + $0x91] sm:$0xff]
      %v1009 = vld [vmem:[%s603 + $0x99] sm:$0xff]
      %v1010 = vld [vmem:[%s603 + $0xa9] sm:$0xff]
      %v1011 = vld [vmem:[%s603 + $0xb1] sm:$0xff]
      %v1012 = vld [vmem:[%s603 + $0xc1] sm:$0xff]
      %v1013 = vld [vmem:[%s603 + $0xc9] sm:$0xff]
      %v1014 = vld [vmem:[%s603 + $0xd9] sm:$0xff]
      %v1015 = vld [vmem:[%s603 + $0xe1] sm:$0xff]
      %v1016 = vld [vmem:[%s603 + $0xf1] sm:$0xff]
      %v1017 = vld [vmem:[%s603 + $0xf9] sm:$0xff]
      %v1018 = vld [vmem:[%s603 + $0x109] sm:$0xff]
      %v1019 = vld [vmem:[%s603 + $0x111] sm:$0xff]
      %v1020 = vld [vmem:[%s603 + $0x121] sm:$0xff]
      %v1021 = vld [vmem:[%s603 + $0x129] sm:$0xff]
      %v1022 = vld [vmem:[%s603 + $0x139] sm:$0xff]
      %v1023 = vld [vmem:[%s603 + $0x141] sm:$0xff]
      %v1024 = vld [vmem:[%s603 + $0x151] sm:$0xff]
      %v1025 = vld [vmem:[%s603 + $0x159] sm:$0xff]
      %v1026 = vld [vmem:[%s603 + $0x169] sm:$0xff]
      %v1027 = vld [vmem:[%s603 + $0x171] sm:$0xff]
      %v1028 = vld [vmem:[%s3 + $0x4] sm:$0x1]
      %v1029 = vperm.slane %v1028, 0
      %v1030 = vmul.f32 %v996, %v1029
      %v1031 = vmul.f32 %v997, %v1029
      %v1032 = vmul.f32 %v998, %v1029
      %v1033 = vmul.f32 %v999, %v1029
      %v1034 = vmul.f32 %v1000, %v1029
      %v1035 = vmul.f32 %v1001, %v1029
      %v1036 = vmul.f32 %v1002, %v1029
      %v1037 = vmul.f32 %v1003, %v1029
      %v1038 = vmul.f32 %v1004, %v1029
      %v1039 = vmul.f32 %v1005, %v1029
      %v1040 = vmul.f32 %v1006, %v1029
      %v1041 = vmul.f32 %v1007, %v1029
      %v1042 = vmul.f32 %v1008, %v1029
      %v1043 = vmul.f32 %v1009, %v1029
      %v1044 = vmul.f32 %v1010, %v1029
      %v1045 = vmul.f32 %v1011, %v1029
      %v1046 = vmul.f32 %v1012, %v1029
      %v1047 = vmul.f32 %v1013, %v1029
      %v1048 = vmul.f32 %v1014, %v1029
      %v1049 = vmul.f32 %v1015, %v1029
      %v1050 = vmul.f32 %v1016, %v1029
      %v1051 = vmul.f32 %v1017, %v1029
      %v1052 = vmul.f32 %v1018, %v1029
      %v1053 = vmul.f32 %v1019, %v1029
      %v1054 = vmul.f32 %v1020, %v1029
      %v1055 = vmul.f32 %v1021, %v1029
      %v1056 = vmul.f32 %v1022, %v1029
      %v1057 = vmul.f32 %v1023, %v1029
      %v1058 = vmul.f32 %v1024, %v1029
      %v1059 = vmul.f32 %v1025, %v1029
      %v1060 = vmul.f32 %v1026, %v1029
      %v1061 = vmul.f32 %v1027, %v1029
      %v1062 = vadd.f32 %v964, %v1030
      %v1063 = vadd.f32 %v965, %v1031
      %v1064 = vadd.f32 %v966, %v1032
      %v1065 = vadd.f32 %v967, %v1033
      %v1066 = vadd.f32 %v968, %v1034
      %v1067 = vadd.f32 %v969, %v1035
      %v1068 = vadd.f32 %v970, %v1036
      %v1069 = vadd.f32 %v971, %v1037
      %v1070 = vadd.f32 %v972, %v1038
      %v1071 = vadd.f32 %v973, %v1039
      %v1072 = vadd.f32 %v974, %v1040
      %v1073 = vadd.f32 %v975, %v1041
      %v1074 = vadd.f32 %v976, %v1042
      %v1075 = vadd.f32 %v977, %v1043
      %v1076 = vadd.f32 %v978, %v1044
      %v1077 = vadd.f32 %v979, %v1045
      %v1078 = vadd.f32 %v980, %v1046
      %v1079 = vadd.f32 %v981, %v1047
      %v1080 = vadd.f32 %v982, %v1048
      %v1081 = vadd.f32 %v983, %v1049
      %v1082 = vadd.f32 %v984, %v1050
      %v1083 = vadd.f32 %v985, %v1051
      %v1084 = vadd.f32 %v986, %v1052
      %v1085 = vadd.f32 %v987, %v1053
      %v1086 = vadd.f32 %v988, %v1054
      %v1087 = vadd.f32 %v989, %v1055
      %v1088 = vadd.f32 %v990, %v1056
      %v1089 = vadd.f32 %v991, %v1057
      %v1090 = vadd.f32 %v992, %v1058
      %v1091 = vadd.f32 %v993, %v1059
      %v1092 = vadd.f32 %v994, %v1060
      %v1093 = vadd.f32 %v995, %v1061
      %v1094 = vld [vmem:[%s603 + $0x2] sm:$0xff]
      %v1095 = vld [vmem:[%s603 + $0xa] sm:$0xff]
      %v1096 = vld [vmem:[%s603 + $0x1a] sm:$0xff]
      %v1097 = vld [vmem:[%s603 + $0x22] sm:$0xff]
      %v1098 = vld [vmem:[%s603 + $0x32] sm:$0xff]
      %v1099 = vld [vmem:[%s603 + $0x3a] sm:$0xff]
      %v1100 = vld [vmem:[%s603 + $0x4a] sm:$0xff]
      %v1101 = vld [vmem:[%s603 + $0x52] sm:$0xff]
      %v1102 = vld [vmem:[%s603 + $0x62] sm:$0xff]
      %v1103 = vld [vmem:[%s603 + $0x6a] sm:$0xff]
      %v1104 = vld [vmem:[%s603 + $0x7a] sm:$0xff]
      %v1105 = vld [vmem:[%s603 + $0x82] sm:$0xff]
      %v1106 = vld [vmem:[%s603 + $0x92] sm:$0xff]
      %v1107 = vld [vmem:[%s603 + $0x9a] sm:$0xff]
      %v1108 = vld [vmem:[%s603 + $0xaa] sm:$0xff]
      %v1109 = vld [vmem:[%s603 + $0xb2] sm:$0xff]
      %v1110 = vld [vmem:[%s603 + $0xc2] sm:$0xff]
      %v1111 = vld [vmem:[%s603 + $0xca] sm:$0xff]
      %v1112 = vld [vmem:[%s603 + $0xda] sm:$0xff]
      %v1113 = vld [vmem:[%s603 + $0xe2] sm:$0xff]
      %v1114 = vld [vmem:[%s603 + $0xf2] sm:$0xff]
      %v1115 = vld [vmem:[%s603 + $0xfa] sm:$0xff]
      %v1116 = vld [vmem:[%s603 + $0x10a] sm:$0xff]
      %v1117 = vld [vmem:[%s603 + $0x112] sm:$0xff]
      %v1118 = vld [vmem:[%s603 + $0x122] sm:$0xff]
      %v1119 = vld [vmem:[%s603 + $0x12a] sm:$0xff]
      %v1120 = vld [vmem:[%s603 + $0x13a] sm:$0xff]
      %v1121 = vld [vmem:[%s603 + $0x142] sm:$0xff]
      %v1122 = vld [vmem:[%s603 + $0x152] sm:$0xff]
      %v1123 = vld [vmem:[%s603 + $0x15a] sm:$0xff]
      %v1124 = vld [vmem:[%s603 + $0x16a] sm:$0xff]
      %v1125 = vld [vmem:[%s603 + $0x172] sm:$0xff]
      %v1126 = vld [vmem:[%s3 + $0x5] sm:$0x1]
      %v1127 = vperm.slane %v1126, 0
      %v1128 = vmul.f32 %v1094, %v1127
      %v1129 = vmul.f32 %v1095, %v1127
      %v1130 = vmul.f32 %v1096, %v1127
      %v1131 = vmul.f32 %v1097, %v1127
      %v1132 = vmul.f32 %v1098, %v1127
      %v1133 = vmul.f32 %v1099, %v1127
      %v1134 = vmul.f32 %v1100, %v1127
      %v1135 = vmul.f32 %v1101, %v1127
      %v1136 = vmul.f32 %v1102, %v1127
      %v1137 = vmul.f32 %v1103, %v1127
      %v1138 = vmul.f32 %v1104, %v1127
      %v1139 = vmul.f32 %v1105, %v1127
      %v1140 = vmul.f32 %v1106, %v1127
      %v1141 = vmul.f32 %v1107, %v1127
      %v1142 = vmul.f32 %v1108, %v1127
      %v1143 = vmul.f32 %v1109, %v1127
      %v1144 = vmul.f32 %v1110, %v1127
      %v1145 = vmul.f32 %v1111, %v1127
      %v1146 = vmul.f32 %v1112, %v1127
      %v1147 = vmul.f32 %v1113, %v1127
      %v1148 = vmul.f32 %v1114, %v1127
      %v1149 = vmul.f32 %v1115, %v1127
      %v1150 = vmul.f32 %v1116, %v1127
      %v1151 = vmul.f32 %v1117, %v1127
      %v1152 = vmul.f32 %v1118, %v1127
      %v1153 = vmul.f32 %v1119, %v1127
      %v1154 = vmul.f32 %v1120, %v1127
      %v1155 = vmul.f32 %v1121, %v1127
      %v1156 = vmul.f32 %v1122, %v1127
      %v1157 = vmul.f32 %v1123, %v1127
      %v1158 = vmul.f32 %v1124, %v1127
      %v1159 = vmul.f32 %v1125, %v1127
      %v1160 = vadd.f32 %v1062, %v1128
      %v1161 = vadd.f32 %v1063, %v1129
      %v1162 = vadd.f32 %v1064, %v1130
      %v1163 = vadd.f32 %v1065, %v1131
      %v1164 = vadd.f32 %v1066, %v1132
      %v1165 = vadd.f32 %v1067, %v1133
      %v1166 = vadd.f32 %v1068, %v1134
      %v1167 = vadd.f32 %v1069, %v1135
      %v1168 = vadd.f32 %v1070, %v1136
      %v1169 = vadd.f32 %v1071, %v1137
      %v1170 = vadd.f32 %v1072, %v1138
      %v1171 = vadd.f32 %v1073, %v1139
      %v1172 = vadd.f32 %v1074, %v1140
      %v1173 = vadd.f32 %v1075, %v1141
      %v1174 = vadd.f32 %v1076, %v1142
      %v1175 = vadd.f32 %v1077, %v1143
      %v1176 = vadd.f32 %v1078, %v1144
      %v1177 = vadd.f32 %v1079, %v1145
      %v1178 = vadd.f32 %v1080, %v1146
      %v1179 = vadd.f32 %v1081, %v1147
      %v1180 = vadd.f32 %v1082, %v1148
      %v1181 = vadd.f32 %v1083, %v1149
      %v1182 = vadd.f32 %v1084, %v1150
      %v1183 = vadd.f32 %v1085, %v1151
      %v1184 = vadd.f32 %v1086, %v1152
      %v1185 = vadd.f32 %v1087, %v1153
      %v1186 = vadd.f32 %v1088, %v1154
      %v1187 = vadd.f32 %v1089, %v1155
      %v1188 = vadd.f32 %v1090, %v1156
      %v1189 = vadd.f32 %v1091, %v1157
      %v1190 = vadd.f32 %v1092, %v1158
      %v1191 = vadd.f32 %v1093, %v1159
      %s1192 = scalar_lea.vmem [#allocation2], 48
      %v1193 = vld [vmem:[%s1192] sm:$0xff]
      %v1194 = vld [vmem:[%s1192 + $0x8] sm:$0xff]
      %v1195 = vld [vmem:[%s1192 + $0x18] sm:$0xff]
      %v1196 = vld [vmem:[%s1192 + $0x20] sm:$0xff]
      %v1197 = vld [vmem:[%s1192 + $0x30] sm:$0xff]
      %v1198 = vld [vmem:[%s1192 + $0x38] sm:$0xff]
      %v1199 = vld [vmem:[%s1192 + $0x48] sm:$0xff]
      %v1200 = vld [vmem:[%s1192 + $0x50] sm:$0xff]
      %v1201 = vld [vmem:[%s1192 + $0x60] sm:$0xff]
      %v1202 = vld [vmem:[%s1192 + $0x68] sm:$0xff]
      %v1203 = vld [vmem:[%s1192 + $0x78] sm:$0xff]
      %v1204 = vld [vmem:[%s1192 + $0x80] sm:$0xff]
      %v1205 = vld [vmem:[%s1192 + $0x90] sm:$0xff]
      %v1206 = vld [vmem:[%s1192 + $0x98] sm:$0xff]
      %v1207 = vld [vmem:[%s1192 + $0xa8] sm:$0xff]
      %v1208 = vld [vmem:[%s1192 + $0xb0] sm:$0xff]
      %v1209 = vld [vmem:[%s1192 + $0xc0] sm:$0xff]
      %v1210 = vld [vmem:[%s1192 + $0xc8] sm:$0xff]
      %v1211 = vld [vmem:[%s1192 + $0xd8] sm:$0xff]
      %v1212 = vld [vmem:[%s1192 + $0xe0] sm:$0xff]
      %v1213 = vld [vmem:[%s1192 + $0xf0] sm:$0xff]
      %v1214 = vld [vmem:[%s1192 + $0xf8] sm:$0xff]
      %v1215 = vld [vmem:[%s1192 + $0x108] sm:$0xff]
      %v1216 = vld [vmem:[%s1192 + $0x110] sm:$0xff]
      %v1217 = vld [vmem:[%s1192 + $0x120] sm:$0xff]
      %v1218 = vld [vmem:[%s1192 + $0x128] sm:$0xff]
      %v1219 = vld [vmem:[%s1192 + $0x138] sm:$0xff]
      %v1220 = vld [vmem:[%s1192 + $0x140] sm:$0xff]
      %v1221 = vld [vmem:[%s1192 + $0x150] sm:$0xff]
      %v1222 = vld [vmem:[%s1192 + $0x158] sm:$0xff]
      %v1223 = vld [vmem:[%s1192 + $0x168] sm:$0xff]
      %v1224 = vld [vmem:[%s1192 + $0x170] sm:$0xff]
      %v1225 = vld [vmem:[%s3 + $0x6] sm:$0x1]
      %v1226 = vperm.slane %v1225, 0
      %v1227 = vmul.f32 %v1193, %v1226
      %v1228 = vmul.f32 %v1194, %v1226
      %v1229 = vmul.f32 %v1195, %v1226
      %v1230 = vmul.f32 %v1196, %v1226
      %v1231 = vmul.f32 %v1197, %v1226
      %v1232 = vmul.f32 %v1198, %v1226
      %v1233 = vmul.f32 %v1199, %v1226
      %v1234 = vmul.f32 %v1200, %v1226
      %v1235 = vmul.f32 %v1201, %v1226
      %v1236 = vmul.f32 %v1202, %v1226
      %v1237 = vmul.f32 %v1203, %v1226
      %v1238 = vmul.f32 %v1204, %v1226
      %v1239 = vmul.f32 %v1205, %v1226
      %v1240 = vmul.f32 %v1206, %v1226
      %v1241 = vmul.f32 %v1207, %v1226
      %v1242 = vmul.f32 %v1208, %v1226
      %v1243 = vmul.f32 %v1209, %v1226
      %v1244 = vmul.f32 %v1210, %v1226
      %v1245 = vmul.f32 %v1211, %v1226
      %v1246 = vmul.f32 %v1212, %v1226
      %v1247 = vmul.f32 %v1213, %v1226
      %v1248 = vmul.f32 %v1214, %v1226
      %v1249 = vmul.f32 %v1215, %v1226
      %v1250 = vmul.f32 %v1216, %v1226
      %v1251 = vmul.f32 %v1217, %v1226
      %v1252 = vmul.f32 %v1218, %v1226
      %v1253 = vmul.f32 %v1219, %v1226
      %v1254 = vmul.f32 %v1220, %v1226
      %v1255 = vmul.f32 %v1221, %v1226
      %v1256 = vmul.f32 %v1222, %v1226
      %v1257 = vmul.f32 %v1223, %v1226
      %v1258 = vmul.f32 %v1224, %v1226
      %v1259 = vadd.f32 %v1160, %v1227
      %v1260 = vadd.f32 %v1161, %v1228
      %v1261 = vadd.f32 %v1162, %v1229
      %v1262 = vadd.f32 %v1163, %v1230
      %v1263 = vadd.f32 %v1164, %v1231
      %v1264 = vadd.f32 %v1165, %v1232
      %v1265 = vadd.f32 %v1166, %v1233
      %v1266 = vadd.f32 %v1167, %v1234
      %v1267 = vadd.f32 %v1168, %v1235
      %v1268 = vadd.f32 %v1169, %v1236
      %v1269 = vadd.f32 %v1170, %v1237
      %v1270 = vadd.f32 %v1171, %v1238
      %v1271 = vadd.f32 %v1172, %v1239
      %v1272 = vadd.f32 %v1173, %v1240
      %v1273 = vadd.f32 %v1174, %v1241
      %v1274 = vadd.f32 %v1175, %v1242
      %v1275 = vadd.f32 %v1176, %v1243
      %v1276 = vadd.f32 %v1177, %v1244
      %v1277 = vadd.f32 %v1178, %v1245
      %v1278 = vadd.f32 %v1179, %v1246
      %v1279 = vadd.f32 %v1180, %v1247
      %v1280 = vadd.f32 %v1181, %v1248
      %v1281 = vadd.f32 %v1182, %v1249
      %v1282 = vadd.f32 %v1183, %v1250
      %v1283 = vadd.f32 %v1184, %v1251
      %v1284 = vadd.f32 %v1185, %v1252
      %v1285 = vadd.f32 %v1186, %v1253
      %v1286 = vadd.f32 %v1187, %v1254
      %v1287 = vadd.f32 %v1188, %v1255
      %v1288 = vadd.f32 %v1189, %v1256
      %v1289 = vadd.f32 %v1190, %v1257
      %v1290 = vadd.f32 %v1191, %v1258
      %v1291 = vld [vmem:[%s1192 + $0x1] sm:$0xff]
      %v1292 = vld [vmem:[%s1192 + $0x9] sm:$0xff]
      %v1293 = vld [vmem:[%s1192 + $0x19] sm:$0xff]
      %v1294 = vld [vmem:[%s1192 + $0x21] sm:$0xff]
      %v1295 = vld [vmem:[%s1192 + $0x31] sm:$0xff]
      %v1296 = vld [vmem:[%s1192 + $0x39] sm:$0xff]
      %v1297 = vld [vmem:[%s1192 + $0x49] sm:$0xff]
      %v1298 = vld [vmem:[%s1192 + $0x51] sm:$0xff]
      %v1299 = vld [vmem:[%s1192 + $0x61] sm:$0xff]
      %v1300 = vld [vmem:[%s1192 + $0x69] sm:$0xff]
      %v1301 = vld [vmem:[%s1192 + $0x79] sm:$0xff]
      %v1302 = vld [vmem:[%s1192 + $0x81] sm:$0xff]
      %v1303 = vld [vmem:[%s1192 + $0x91] sm:$0xff]
      %v1304 = vld [vmem:[%s1192 + $0x99] sm:$0xff]
      %v1305 = vld [vmem:[%s1192 + $0xa9] sm:$0xff]
      %v1306 = vld [vmem:[%s1192 + $0xb1] sm:$0xff]
      %v1307 = vld [vmem:[%s1192 + $0xc1] sm:$0xff]
      %v1308 = vld [vmem:[%s1192 + $0xc9] sm:$0xff]
      %v1309 = vld [vmem:[%s1192 + $0xd9] sm:$0xff]
      %v1310 = vld [vmem:[%s1192 + $0xe1] sm:$0xff]
      %v1311 = vld [vmem:[%s1192 + $0xf1] sm:$0xff]
      %v1312 = vld [vmem:[%s1192 + $0xf9] sm:$0xff]
      %v1313 = vld [vmem:[%s1192 + $0x109] sm:$0xff]
      %v1314 = vld [vmem:[%s1192 + $0x111] sm:$0xff]
      %v1315 = vld [vmem:[%s1192 + $0x121] sm:$0xff]
      %v1316 = vld [vmem:[%s1192 + $0x129] sm:$0xff]
      %v1317 = vld [vmem:[%s1192 + $0x139] sm:$0xff]
      %v1318 = vld [vmem:[%s1192 + $0x141] sm:$0xff]
      %v1319 = vld [vmem:[%s1192 + $0x151] sm:$0xff]
      %v1320 = vld [vmem:[%s1192 + $0x159] sm:$0xff]
      %v1321 = vld [vmem:[%s1192 + $0x169] sm:$0xff]
      %v1322 = vld [vmem:[%s1192 + $0x171] sm:$0xff]
      %v1323 = vld [vmem:[%s3 + $0x7] sm:$0x1]
      %v1324 = vperm.slane %v1323, 0
      %v1325 = vmul.f32 %v1291, %v1324
      %v1326 = vmul.f32 %v1292, %v1324
      %v1327 = vmul.f32 %v1293, %v1324
      %v1328 = vmul.f32 %v1294, %v1324
      %v1329 = vmul.f32 %v1295, %v1324
      %v1330 = vmul.f32 %v1296, %v1324
      %v1331 = vmul.f32 %v1297, %v1324
      %v1332 = vmul.f32 %v1298, %v1324
      %v1333 = vmul.f32 %v1299, %v1324
      %v1334 = vmul.f32 %v1300, %v1324
      %v1335 = vmul.f32 %v1301, %v1324
      %v1336 = vmul.f32 %v1302, %v1324
      %v1337 = vmul.f32 %v1303, %v1324
      %v1338 = vmul.f32 %v1304, %v1324
      %v1339 = vmul.f32 %v1305, %v1324
      %v1340 = vmul.f32 %v1306, %v1324
      %v1341 = vmul.f32 %v1307, %v1324
      %v1342 = vmul.f32 %v1308, %v1324
      %v1343 = vmul.f32 %v1309, %v1324
      %v1344 = vmul.f32 %v1310, %v1324
      %v1345 = vmul.f32 %v1311, %v1324
      %v1346 = vmul.f32 %v1312, %v1324
      %v1347 = vmul.f32 %v1313, %v1324
      %v1348 = vmul.f32 %v1314, %v1324
      %v1349 = vmul.f32 %v1315, %v1324
      %v1350 = vmul.f32 %v1316, %v1324
      %v1351 = vmul.f32 %v1317, %v1324
      %v1352 = vmul.f32 %v1318, %v1324
      %v1353 = vmul.f32 %v1319, %v1324
      %v1354 = vmul.f32 %v1320, %v1324
      %v1355 = vmul.f32 %v1321, %v1324
      %v1356 = vmul.f32 %v1322, %v1324
      %v1357 = vadd.f32 %v1259, %v1325
      %v1358 = vadd.f32 %v1260, %v1326
      %v1359 = vadd.f32 %v1261, %v1327
      %v1360 = vadd.f32 %v1262, %v1328
      %v1361 = vadd.f32 %v1263, %v1329
      %v1362 = vadd.f32 %v1264, %v1330
      %v1363 = vadd.f32 %v1265, %v1331
      %v1364 = vadd.f32 %v1266, %v1332
      %v1365 = vadd.f32 %v1267, %v1333
      %v1366 = vadd.f32 %v1268, %v1334
      %v1367 = vadd.f32 %v1269, %v1335
      %v1368 = vadd.f32 %v1270, %v1336
      %v1369 = vadd.f32 %v1271, %v1337
      %v1370 = vadd.f32 %v1272, %v1338
      %v1371 = vadd.f32 %v1273, %v1339
      %v1372 = vadd.f32 %v1274, %v1340
      %v1373 = vadd.f32 %v1275, %v1341
      %v1374 = vadd.f32 %v1276, %v1342
      %v1375 = vadd.f32 %v1277, %v1343
      %v1376 = vadd.f32 %v1278, %v1344
      %v1377 = vadd.f32 %v1279, %v1345
      %v1378 = vadd.f32 %v1280, %v1346
      %v1379 = vadd.f32 %v1281, %v1347
      %v1380 = vadd.f32 %v1282, %v1348
      %v1381 = vadd.f32 %v1283, %v1349
      %v1382 = vadd.f32 %v1284, %v1350
      %v1383 = vadd.f32 %v1285, %v1351
      %v1384 = vadd.f32 %v1286, %v1352
      %v1385 = vadd.f32 %v1287, %v1353
      %v1386 = vadd.f32 %v1288, %v1354
      %v1387 = vadd.f32 %v1289, %v1355
      %v1388 = vadd.f32 %v1290, %v1356
      %v1389 = vld [vmem:[%s1192 + $0x2] sm:$0xff]
      %v1390 = vld [vmem:[%s1192 + $0xa] sm:$0xff]
      %v1391 = vld [vmem:[%s1192 + $0x1a] sm:$0xff]
      %v1392 = vld [vmem:[%s1192 + $0x22] sm:$0xff]
      %v1393 = vld [vmem:[%s1192 + $0x32] sm:$0xff]
      %v1394 = vld [vmem:[%s1192 + $0x3a] sm:$0xff]
      %v1395 = vld [vmem:[%s1192 + $0x4a] sm:$0xff]
      %v1396 = vld [vmem:[%s1192 + $0x52] sm:$0xff]
      %v1397 = vld [vmem:[%s1192 + $0x62] sm:$0xff]
      %v1398 = vld [vmem:[%s1192 + $0x6a] sm:$0xff]
      %v1399 = vld [vmem:[%s1192 + $0x7a] sm:$0xff]
      %v1400 = vld [vmem:[%s1192 + $0x82] sm:$0xff]
      %v1401 = vld [vmem:[%s1192 + $0x92] sm:$0xff]
      %v1402 = vld [vmem:[%s1192 + $0x9a] sm:$0xff]
      %v1403 = vld [vmem:[%s1192 + $0xaa] sm:$0xff]
      %v1404 = vld [vmem:[%s1192 + $0xb2] sm:$0xff]
      %v1405 = vld [vmem:[%s1192 + $0xc2] sm:$0xff]
      %v1406 = vld [vmem:[%s1192 + $0xca] sm:$0xff]
      %v1407 = vld [vmem:[%s1192 + $0xda] sm:$0xff]
      %v1408 = vld [vmem:[%s1192 + $0xe2] sm:$0xff]
      %v1409 = vld [vmem:[%s1192 + $0xf2] sm:$0xff]
      %v1410 = vld [vmem:[%s1192 + $0xfa] sm:$0xff]
      %v1411 = vld [vmem:[%s1192 + $0x10a] sm:$0xff]
      %v1412 = vld [vmem:[%s1192 + $0x112] sm:$0xff]
      %v1413 = vld [vmem:[%s1192 + $0x122] sm:$0xff]
      %v1414 = vld [vmem:[%s1192 + $0x12a] sm:$0xff]
      %v1415 = vld [vmem:[%s1192 + $0x13a] sm:$0xff]
      %v1416 = vld [vmem:[%s1192 + $0x142] sm:$0xff]
      %v1417 = vld [vmem:[%s1192 + $0x152] sm:$0xff]
      %v1418 = vld [vmem:[%s1192 + $0x15a] sm:$0xff]
      %v1419 = vld [vmem:[%s1192 + $0x16a] sm:$0xff]
      %v1420 = vld [vmem:[%s1192 + $0x172] sm:$0xff]
      %v1421 = vld [vmem:[%s3 + $0x8] sm:$0x1]
      %v1422 = vperm.slane %v1421, 0
      %v1423 = vmul.f32 %v1389, %v1422
      %v1424 = vmul.f32 %v1390, %v1422
      %v1425 = vmul.f32 %v1391, %v1422
      %v1426 = vmul.f32 %v1392, %v1422
      %v1427 = vmul.f32 %v1393, %v1422
      %v1428 = vmul.f32 %v1394, %v1422
      %v1429 = vmul.f32 %v1395, %v1422
      %v1430 = vmul.f32 %v1396, %v1422
      %v1431 = vmul.f32 %v1397, %v1422
      %v1432 = vmul.f32 %v1398, %v1422
      %v1433 = vmul.f32 %v1399, %v1422
      %v1434 = vmul.f32 %v1400, %v1422
      %v1435 = vmul.f32 %v1401, %v1422
      %v1436 = vmul.f32 %v1402, %v1422
      %v1437 = vmul.f32 %v1403, %v1422
      %v1438 = vmul.f32 %v1404, %v1422
      %v1439 = vmul.f32 %v1405, %v1422
      %v1440 = vmul.f32 %v1406, %v1422
      %v1441 = vmul.f32 %v1407, %v1422
      %v1442 = vmul.f32 %v1408, %v1422
      %v1443 = vmul.f32 %v1409, %v1422
      %v1444 = vmul.f32 %v1410, %v1422
      %v1445 = vmul.f32 %v1411, %v1422
      %v1446 = vmul.f32 %v1412, %v1422
      %v1447 = vmul.f32 %v1413, %v1422
      %v1448 = vmul.f32 %v1414, %v1422
      %v1449 = vmul.f32 %v1415, %v1422
      %v1450 = vmul.f32 %v1416, %v1422
      %v1451 = vmul.f32 %v1417, %v1422
      %v1452 = vmul.f32 %v1418, %v1422
      %v1453 = vmul.f32 %v1419, %v1422
      %v1454 = vmul.f32 %v1420, %v1422
      %v1455 = vadd.f32 %v1357, %v1423
      %v1456 = vadd.f32 %v1358, %v1424
      %v1457 = vadd.f32 %v1359, %v1425
      %v1458 = vadd.f32 %v1360, %v1426
      %v1459 = vadd.f32 %v1361, %v1427
      %v1460 = vadd.f32 %v1362, %v1428
      %v1461 = vadd.f32 %v1363, %v1429
      %v1462 = vadd.f32 %v1364, %v1430
      %v1463 = vadd.f32 %v1365, %v1431
      %v1464 = vadd.f32 %v1366, %v1432
      %v1465 = vadd.f32 %v1367, %v1433
      %v1466 = vadd.f32 %v1368, %v1434
      %v1467 = vadd.f32 %v1369, %v1435
      %v1468 = vadd.f32 %v1370, %v1436
      %v1469 = vadd.f32 %v1371, %v1437
      %v1470 = vadd.f32 %v1372, %v1438
      %v1471 = vadd.f32 %v1373, %v1439
      %v1472 = vadd.f32 %v1374, %v1440
      %v1473 = vadd.f32 %v1375, %v1441
      %v1474 = vadd.f32 %v1376, %v1442
      %v1475 = vadd.f32 %v1377, %v1443
      %v1476 = vadd.f32 %v1378, %v1444
      %v1477 = vadd.f32 %v1379, %v1445
      %v1478 = vadd.f32 %v1380, %v1446
      %v1479 = vadd.f32 %v1381, %v1447
      %v1480 = vadd.f32 %v1382, %v1448
      %v1481 = vadd.f32 %v1383, %v1449
      %v1482 = vadd.f32 %v1384, %v1450
      %v1483 = vadd.f32 %v1385, %v1451
      %v1484 = vadd.f32 %v1386, %v1452
      %v1485 = vadd.f32 %v1387, %v1453
      %v1486 = vadd.f32 %v1388, %v1454
      %v1487 = vld [vmem:[%s4] sm:$0x1]
      %v1489 = vperm.slane %v1487, 0
      %v1491 = vadd.f32 %v1455, %v1489
      %v1492 = vadd.f32 %v1456, %v1489
      %v1493 = vadd.f32 %v1457, %v1489
      %v1494 = vadd.f32 %v1458, %v1489
      %v1495 = vadd.f32 %v1459, %v1489
      %v1496 = vadd.f32 %v1460, %v1489
      %v1497 = vadd.f32 %v1461, %v1489
      %v1498 = vadd.f32 %v1462, %v1489
      %v1499 = vadd.f32 %v1463, %v1489
      %v1500 = vadd.f32 %v1464, %v1489
      %v1501 = vadd.f32 %v1465, %v1489
      %v1502 = vadd.f32 %v1466, %v1489
      %v1503 = vadd.f32 %v1467, %v1489
      %v1504 = vadd.f32 %v1468, %v1489
      %v1505 = vadd.f32 %v1469, %v1489
      %v1506 = vadd.f32 %v1470, %v1489
      %v1507 = vadd.f32 %v1471, %v1489
      %v1508 = vadd.f32 %v1472, %v1489
      %v1509 = vadd.f32 %v1473, %v1489
      %v1510 = vadd.f32 %v1474, %v1489
      %v1511 = vadd.f32 %v1475, %v1489
      %v1512 = vadd.f32 %v1476, %v1489
      %v1513 = vadd.f32 %v1477, %v1489
      %v1514 = vadd.f32 %v1478, %v1489
      %v1515 = vadd.f32 %v1479, %v1489
      %v1516 = vadd.f32 %v1480, %v1489
      %v1517 = vadd.f32 %v1481, %v1489
      %v1518 = vadd.f32 %v1482, %v1489
      %v1519 = vadd.f32 %v1483, %v1489
      %v1520 = vadd.f32 %v1484, %v1489
      %v1521 = vadd.f32 %v1485, %v1489
      %v1522 = vadd.f32 %v1486, %v1489
      %v1523 = vld [vmem:[%s5] sm:$0xff]
      %v1524 = vld [vmem:[%s6] sm:$0x1]
      %v1526 = vperm.slane %v1524, 0
      %v1529 = vsel %vm316, %v1491, 0
      %v1532 = vsel %vm316, %v1492, 0
      %v1535 = vsel %vm316, %v1493, 0
      %v1538 = vsel %vm316, %v1494, 0
      %v1541 = vsel %vm316, %v1495, 0
      %v1544 = vsel %vm316, %v1496, 0
      %v1547 = vsel %vm316, %v1497, 0
      %v1550 = vsel %vm316, %v1498, 0
      %v1553 = vsel %vm316, %v1499, 0
      %v1556 = vsel %vm316, %v1500, 0
      %v1559 = vsel %vm316, %v1501, 0
      %v1562 = vsel %vm316, %v1502, 0
      %v1565 = vsel %vm316, %v1503, 0
      %v1568 = vsel %vm316, %v1504, 0
      %v1571 = vsel %vm316, %v1505, 0
      %v1574 = vsel %vm316, %v1506, 0
      %v1577 = vsel %vm316, %v1507, 0
      %v1580 = vsel %vm316, %v1508, 0
      %v1583 = vsel %vm316, %v1509, 0
      %v1586 = vsel %vm316, %v1510, 0
      %v1589 = vsel %vm316, %v1511, 0
      %v1592 = vsel %vm316, %v1512, 0
      %v1595 = vsel %vm316, %v1513, 0
      %v1598 = vsel %vm316, %v1514, 0
      %v1601 = vsel %vm316, %v1515, 0
      %v1604 = vsel %vm316, %v1516, 0
      %v1607 = vsel %vm316, %v1517, 0
      %v1610 = vsel %vm316, %v1518, 0
      %v1613 = vsel %vm316, %v1519, 0
      %v1616 = vsel %vm316, %v1520, 0
      %v1619 = vsel %vm316, %v1521, 0
      %v1622 = vsel %vm316, %v1522, 0
      %1624 = vmatpush.msra.mxu0 0.0
      %1625 = vmatpush.msra.mxu0 0.0
      %1626 = vmatpush.msra.mxu0 0.0
      %1627 = vmatpush.msra.mxu0 0.0
      %1628 = vmatpush.msra.mxu0 0.0
      %1629 = vmatpush.msra.mxu0 0.0
      %1630 = vmatpush.msra.mxu0 0.0
      %1631 = vmatpush.msra.mxu0 0.0
      %1632 = vmatpush.msra.mxu0 0.0
      %1633 = vmatpush.msra.mxu0 0.0
      %1634 = vmatpush.msra.mxu0 0.0
      %1635 = vmatpush.msra.mxu0 0.0
      %1636 = vmatpush.msra.mxu0 0.0
      %1637 = vmatpush.msra.mxu0 0.0
      %1638 = vmatpush.msra.mxu0 0.0
      %1639 = vmatpush.msra.mxu0 %v1523
      %1640 = vmatmul.f32.gmra.mxu0 %v1529
      %v1641 = vpop.f32.mrf.mxu0
      %v1642 = vadd.f32 %v1526, %v1641
      %1643 = vmatmul.f32.gmra.mxu0 %v1532
      %v1644 = vpop.f32.mrf.mxu0
      %v1645 = vadd.f32 %v1526, %v1644
      %1646 = vmatmul.f32.gmra.mxu0 %v1535
      %v1647 = vpop.f32.mrf.mxu0
      %v1648 = vadd.f32 %v1526, %v1647
      %1649 = vmatmul.f32.gmra.mxu0 %v1538
      %v1650 = vpop.f32.mrf.mxu0
      %v1651 = vadd.f32 %v1526, %v1650
      %1652 = vmatmul.f32.gmra.mxu0 %v1541
      %v1653 = vpop.f32.mrf.mxu0
      %v1654 = vadd.f32 %v1526, %v1653
      %1655 = vmatmul.f32.gmra.mxu0 %v1544
      %v1656 = vpop.f32.mrf.mxu0
      %v1657 = vadd.f32 %v1526, %v1656
      %1658 = vmatmul.f32.gmra.mxu0 %v1547
      %v1659 = vpop.f32.mrf.mxu0
      %v1660 = vadd.f32 %v1526, %v1659
      %1661 = vmatmul.f32.gmra.mxu0 %v1550
      %v1662 = vpop.f32.mrf.mxu0
      %v1663 = vadd.f32 %v1526, %v1662
      %1664 = vmatmul.f32.gmra.mxu0 %v1553
      %v1665 = vpop.f32.mrf.mxu0
      %v1666 = vadd.f32 %v1526, %v1665
      %1667 = vmatmul.f32.gmra.mxu0 %v1556
      %v1668 = vpop.f32.mrf.mxu0
      %v1669 = vadd.f32 %v1526, %v1668
      %1670 = vmatmul.f32.gmra.mxu0 %v1559
      %v1671 = vpop.f32.mrf.mxu0
      %v1672 = vadd.f32 %v1526, %v1671
      %1673 = vmatmul.f32.gmra.mxu0 %v1562
      %v1674 = vpop.f32.mrf.mxu0
      %v1675 = vadd.f32 %v1526, %v1674
      %1676 = vmatmul.f32.gmra.mxu0 %v1565
      %v1677 = vpop.f32.mrf.mxu0
      %v1678 = vadd.f32 %v1526, %v1677
      %1679 = vmatmul.f32.gmra.mxu0 %v1568
      %v1680 = vpop.f32.mrf.mxu0
      %v1681 = vadd.f32 %v1526, %v1680
      %1682 = vmatmul.f32.gmra.mxu0 %v1571
      %v1683 = vpop.f32.mrf.mxu0
      %v1684 = vadd.f32 %v1526, %v1683
      %1685 = vmatmul.f32.gmra.mxu0 %v1574
      %v1686 = vpop.f32.mrf.mxu0
      %v1687 = vadd.f32 %v1526, %v1686
      %1688 = vmatmul.f32.gmra.mxu0 %v1577
      %v1689 = vpop.f32.mrf.mxu0
      %v1690 = vadd.f32 %v1526, %v1689
      %1691 = vmatmul.f32.gmra.mxu0 %v1580
      %v1692 = vpop.f32.mrf.mxu0
      %v1693 = vadd.f32 %v1526, %v1692
      %1694 = vmatmul.f32.gmra.mxu0 %v1583
      %v1695 = vpop.f32.mrf.mxu0
      %v1696 = vadd.f32 %v1526, %v1695
      %1697 = vmatmul.f32.gmra.mxu0 %v1586
      %v1698 = vpop.f32.mrf.mxu0
      %v1699 = vadd.f32 %v1526, %v1698
      %1700 = vmatmul.f32.gmra.mxu0 %v1589
      %v1701 = vpop.f32.mrf.mxu0
      %v1702 = vadd.f32 %v1526, %v1701
      %1703 = vmatmul.f32.gmra.mxu0 %v1592
      %v1704 = vpop.f32.mrf.mxu0
      %v1705 = vadd.f32 %v1526, %v1704
      %1706 = vmatmul.f32.gmra.mxu0 %v1595
      %v1707 = vpop.f32.mrf.mxu0
      %v1708 = vadd.f32 %v1526, %v1707
      %1709 = vmatmul.f32.gmra.mxu0 %v1598
      %v1710 = vpop.f32.mrf.mxu0
      %v1711 = vadd.f32 %v1526, %v1710
      %1712 = vmatmul.f32.gmra.mxu0 %v1601
      %v1713 = vpop.f32.mrf.mxu0
      %v1714 = vadd.f32 %v1526, %v1713
      %1715 = vmatmul.f32.gmra.mxu0 %v1604
      %v1716 = vpop.f32.mrf.mxu0
      %v1717 = vadd.f32 %v1526, %v1716
      %1718 = vmatmul.f32.gmra.mxu0 %v1607
      %v1719 = vpop.f32.mrf.mxu0
      %v1720 = vadd.f32 %v1526, %v1719
      %1721 = vmatmul.f32.gmra.mxu0 %v1610
      %v1722 = vpop.f32.mrf.mxu0
      %v1723 = vadd.f32 %v1526, %v1722
      %1724 = vmatmul.f32.gmra.mxu0 %v1613
      %v1725 = vpop.f32.mrf.mxu0
      %v1726 = vadd.f32 %v1526, %v1725
      %1727 = vmatmul.f32.gmra.mxu0 %v1616
      %v1728 = vpop.f32.mrf.mxu0
      %v1729 = vadd.f32 %v1526, %v1728
      %1730 = vmatmul.f32.gmra.mxu0 %v1619
      %v1731 = vpop.f32.mrf.mxu0
      %v1732 = vadd.f32 %v1526, %v1731
      %1733 = vmatmul.f32.gmra.mxu0 %v1622
      %v1734 = vpop.f32.mrf.mxu0
      %v1735 = vadd.f32 %v1526, %v1734
      %1736 = vdwg.mxu0
      %v1737 = vmax.f32 %v1642, 0.0
      %v1738 = vmax.f32 %v1645, 0.0
      %v1739 = vmax.f32 %v1648, 0.0
      %v1740 = vmax.f32 %v1651, 0.0
      %v1741 = vmax.f32 %v1654, 0.0
      %v1742 = vmax.f32 %v1657, 0.0
      %v1743 = vmax.f32 %v1660, 0.0
      %v1744 = vmax.f32 %v1663, 0.0
      %v1745 = vmax.f32 %v1666, 0.0
      %v1746 = vmax.f32 %v1669, 0.0
      %v1747 = vmax.f32 %v1672, 0.0
      %v1748 = vmax.f32 %v1675, 0.0
      %v1749 = vmax.f32 %v1678, 0.0
      %v1750 = vmax.f32 %v1681, 0.0
      %v1751 = vmax.f32 %v1684, 0.0
      %v1752 = vmax.f32 %v1687, 0.0
      %v1753 = vmax.f32 %v1690, 0.0
      %v1754 = vmax.f32 %v1693, 0.0
      %v1755 = vmax.f32 %v1696, 0.0
      %v1756 = vmax.f32 %v1699, 0.0
      %v1757 = vmax.f32 %v1702, 0.0
      %v1758 = vmax.f32 %v1705, 0.0
      %v1759 = vmax.f32 %v1708, 0.0
      %v1760 = vmax.f32 %v1711, 0.0
      %v1761 = vmax.f32 %v1714, 0.0
      %v1762 = vmax.f32 %v1717, 0.0
      %v1763 = vmax.f32 %v1720, 0.0
      %v1764 = vmax.f32 %v1723, 0.0
      %v1765 = vmax.f32 %v1726, 0.0
      %v1766 = vmax.f32 %v1729, 0.0
      %v1767 = vmax.f32 %v1732, 0.0
      %v1768 = vmax.f32 %v1735, 0.0
      %1769 = vst.msk [vmem:[%s278] sm:$0xff] %vm316, %v1737
      %1770 = vst.msk [vmem:[%s278 + $0x8] sm:$0xff] %vm316, %v1738
      %1771 = vst.msk [vmem:[%s278 + $0x10] sm:$0xff] %vm316, %v1739
      %1772 = vst.msk [vmem:[%s278 + $0x18] sm:$0xff] %vm316, %v1740
      %1773 = vst.msk [vmem:[%s278 + $0x20] sm:$0xff] %vm316, %v1741
      %1774 = vst.msk [vmem:[%s278 + $0x28] sm:$0xff] %vm316, %v1742
      %1775 = vst.msk [vmem:[%s278 + $0x30] sm:$0xff] %vm316, %v1743
      %1776 = vst.msk [vmem:[%s278 + $0x38] sm:$0xff] %vm316, %v1744
      %1777 = vst.msk [vmem:[%s278 + $0x40] sm:$0xff] %vm316, %v1745
      %1778 = vst.msk [vmem:[%s278 + $0x48] sm:$0xff] %vm316, %v1746
      %1779 = vst.msk [vmem:[%s278 + $0x50] sm:$0xff] %vm316, %v1747
      %1780 = vst.msk [vmem:[%s278 + $0x58] sm:$0xff] %vm316, %v1748
      %1781 = vst.msk [vmem:[%s278 + $0x60] sm:$0xff] %vm316, %v1749
      %1782 = vst.msk [vmem:[%s278 + $0x68] sm:$0xff] %vm316, %v1750
      %1783 = vst.msk [vmem:[%s278 + $0x70] sm:$0xff] %vm316, %v1751
      %1784 = vst.msk [vmem:[%s278 + $0x78] sm:$0xff] %vm316, %v1752
      %1785 = vst.msk [vmem:[%s278 + $0x80] sm:$0xff] %vm316, %v1753
      %1786 = vst.msk [vmem:[%s278 + $0x88] sm:$0xff] %vm316, %v1754
      %1787 = vst.msk [vmem:[%s278 + $0x90] sm:$0xff] %vm316, %v1755
      %1788 = vst.msk [vmem:[%s278 + $0x98] sm:$0xff] %vm316, %v1756
      %1789 = vst.msk [vmem:[%s278 + $0xa0] sm:$0xff] %vm316, %v1757
      %1790 = vst.msk [vmem:[%s278 + $0xa8] sm:$0xff] %vm316, %v1758
      %1791 = vst.msk [vmem:[%s278 + $0xb0] sm:$0xff] %vm316, %v1759
      %1792 = vst.msk [vmem:[%s278 + $0xb8] sm:$0xff] %vm316, %v1760
      %1793 = vst.msk [vmem:[%s278 + $0xc0] sm:$0xff] %vm316, %v1761
      %1794 = vst.msk [vmem:[%s278 + $0xc8] sm:$0xff] %vm316, %v1762
      %1795 = vst.msk [vmem:[%s278 + $0xd0] sm:$0xff] %vm316, %v1763
      %1796 = vst.msk [vmem:[%s278 + $0xd8] sm:$0xff] %vm316, %v1764
      %1797 = vst.msk [vmem:[%s278 + $0xe0] sm:$0xff] %vm316, %v1765
      %1798 = vst.msk [vmem:[%s278 + $0xe8] sm:$0xff] %vm316, %v1766
      %1799 = vst.msk [vmem:[%s278 + $0xf0] sm:$0xff] %vm316, %v1767
      %1800 = vst.msk [vmem:[%s278 + $0xf8] sm:$0xff] %vm316, %v1768
      %p1801 = scmp.lt.s32.totalorder %s18, 1
      %s1802 = scalar_select %p1801, %s18, 1
      %s1803 = smul.addr %s1802, 32
      %s1804 = smul.addr %s1803, 8
      %s1805 = scalar_lea.vmem %s7, %s1804
      // Predicated region
      $region49: #{inverted_residual_forward.1} parent=47 // pred_check
        %p1806 = pneg %p188
      $region50: #{inverted_residual_forward.1} parent=47 // pred_check_branch
        %1808 = sbr.rel (%p1806) target = $region52
      $region51: #{inverted_residual_forward.1} parent=47 // pred_region
        _
      $region52: #{inverted_residual_forward.1} parent=47 // pred_fallthru
        _
    $region48: #{inverted_residual_forward.1} parent=5 // pred_fallthru
      _
    %p1809 = scmp.le.s32.totalorder 2, %s13
    // Predicated region
    $region53: #{inverted_residual_forward.1} parent=5 // pred_check
      %p1810 = pneg %p1809
    $region54: #{inverted_residual_forward.1} parent=5 // pred_check_branch
      %1812 = sbr.rel (%p1810) target = $region56
    $region55: #{inverted_residual_forward.1} parent=5 // pred_region
      %s1813 = ssub.s32 %s13, 2
      // Predicated region
      $region57: #{inverted_residual_forward.1} parent=55 // pred_check
        %p1814 = pneg %p194
      $region58: #{inverted_residual_forward.1} parent=55 // pred_check_branch
        %1816 = sbr.rel (%p1814) target = $region60
      $region59: #{inverted_residual_forward.1} parent=55 // pred_region
        %p1817 = scmp.lt.s32.totalorder %s19, 1
        %s1818 = scalar_select %p1817, %s19, 1
        %s1819 = smul.addr %s1818, 32
        %s1820 = smul.addr %s1819, 8
        %s1821 = scalar_lea.vmem %s7, %s1820
      $region60: #{inverted_residual_forward.1} parent=55 // pred_fallthru
        _
    $region56: #{inverted_residual_forward.1} parent=5 // pred_fallthru
      _
  $region6: #{inverted_residual_forward.1} parent=0 // loop_footer
    %s17 = sadd.s32 1, %s13
  $region7: #{inverted_residual_forward.1} parent=0 // loop_footer_branch
    %12 = sbr.rel target = $region3
  $region8: #{inverted_residual_forward.1} parent=0 // loop_exit
    _

</llo_original>
